<compile_context>
chip_gen: v6e
topology: v6e:2x2x1
jax: 0.10.0
libtpu: 0.0.40
codegen_flags: <defaults>
</compile_context>

<pallas_src>
import math

import jax
import jax.numpy as jnp
from jax.experimental import pallas as pl
from jax.experimental.pallas import tpu as pltpu

_LN_EPS = 1e-12
_F32 = 4  # bytes


def _gelu_erf(x):
    # exact erf-based gelu used by the PyTorch module
    return x * 0.5 * (1.0 + jax.lax.erf(x / math.sqrt(2.0)))


def _round_up(x, m):
    return ((x + m - 1) // m) * m


# ----------------------------- kernels --------------------------------------


def _transform_kernel(x_ref, w1t_ref, b1_ref, gamma_ref, beta_ref, h_ref):
    # x_ref: (tm, H), w1t_ref: (H, H) already transposed -> no in-kernel .T
    x = x_ref[...]
    h = jnp.dot(x, w1t_ref[...], preferred_element_type=jnp.float32)
    h = h + b1_ref[...]                                   # (1, H) broadcast
    h = _gelu_erf(h)
    # LayerNorm over hidden axis, eps = 1e-12
    mean = jnp.mean(h, axis=-1, keepdims=True)
    centered = h - mean
    var = jnp.mean(centered * centered, axis=-1, keepdims=True)
    h = centered * jax.lax.rsqrt(var + _LN_EPS)
    h = h * gamma_ref[...] + beta_ref[...]
    h_ref[...] = h.astype(h_ref.dtype)


def _decoder_kernel(h_ref, wv_ref, bv_ref, out_ref):
    # h_ref: (tm, H), wv_ref: (H, tv) pre-transposed embedding tile -> no .T
    logits = jnp.dot(h_ref[...], wv_ref[...], preferred_element_type=jnp.float32)
    out_ref[...] = (logits + bv_ref[...]).astype(out_ref.dtype)


# ----------------------------- wrapper ---------------------------------------


def _vmem_limit(tile_bytes):
    # never go below the default scoped limit; add headroom; stay far from
    # v7x's 64 MiB physical VMEM.
    return int(max(32 * 1024 * 1024, min(tile_bytes + (4 << 20), 56 * 1024 * 1024)))


def bert_lm_prediction_head(x, w1, b1, gamma, beta, dec_w, dec_b, *,
                            tm_max=256, tv_max=512,
                            decoder_dtype=jnp.float32):
    """x: (B, S, H) f32; w1: (H, H) nn.Linear weight (out, in); dec_w: (V, H)
    tied embedding weights; dec_b: (V,). Returns (B, S, V) f32 logits."""
    B, S, H = x.shape
    V = dec_w.shape[0]
    M = B * S

    # --- tile sizes + padded extents (handles V not a multiple of the tile) ---
    tm = min(tm_max, _round_up(M, 8))
    Mp = _round_up(M, tm)
    tv = min(tv_max, _round_up(V, 128))
    Vp = _round_up(V, tv)

    dec_elem = jnp.dtype(decoder_dtype).itemsize

    # --- wrapper-side layout prep (one-time XLA work, keeps kernels transpose-free)
    x2 = x.reshape(M, H).astype(jnp.float32)
    if Mp != M:
        x2 = jnp.pad(x2, ((0, Mp - M), (0, 0)))

    w1t = jnp.transpose(w1)                       # (H_in, H_out)
    b1_2 = b1.reshape(1, H).astype(jnp.float32)
    gamma_2 = gamma.reshape(1, H).astype(jnp.float32)
    beta_2 = beta.reshape(1, H).astype(jnp.float32)

    dec_wt = jnp.transpose(dec_w)                 # (H, V)
    dec_b_2 = dec_b.reshape(1, V).astype(jnp.float32)
    if Vp != V:
        dec_wt = jnp.pad(dec_wt, ((0, 0), (0, Vp - V)))
        dec_b_2 = jnp.pad(dec_b_2, ((0, 0), (0, Vp - V)))
    dec_wt = dec_wt.astype(decoder_dtype)

    # --- kernel 1: transform (dense + gelu + LayerNorm), tiled over M ---------
    t_tile_bytes = _F32 * (2 * tm * H      # x block, double-buffered
                           + 2 * H * H     # W1 (constant index, worst case 2x)
                           + 6 * H         # b1/gamma/beta
                           + 2 * tm * H)   # h output block
    h = pl.pallas_call(
        _transform_kernel,
        out_shape=jax.ShapeDtypeStruct((Mp, H), decoder_dtype),
        grid=(Mp // tm,),
        in_specs=[
            pl.BlockSpec((tm, H), lambda i: (i, 0)),   # x tokens
            pl.BlockSpec((H, H), lambda i: (0, 0)),    # W1^T (resident)
            pl.BlockSpec((1, H), lambda i: (0, 0)),    # b1
            pl.BlockSpec((1, H), lambda i: (0, 0)),    # gamma
            pl.BlockSpec((1, H), lambda i: (0, 0)),    # beta
        ],
        out_specs=pl.BlockSpec((tm, H), lambda i: (i, 0)),
        compiler_params=pltpu.CompilerParams(
            dimension_semantics=("parallel",),
            vmem_limit_bytes=_vmem_limit(t_tile_bytes),
        ),
        cost_estimate=pl.CostEstimate(
            flops=2 * Mp * H * H,
            transcendentals=Mp * H,
            bytes_accessed=_F32 * (Mp * H + H * H + 3 * H) + dec_elem * Mp * H,
        ),
    )(x2, w1t, b1_2, gamma_2, beta_2)

    # --- kernel 2: decoder GEMM, (M tiles x V tiles) parallel grid ------------
    d_tile_bytes = (2 * dec_elem * (tm * H + H * tv)       # h block + W_emb tile
                    + 2 * _F32 * (tv + tm * tv))           # bias tile + out tile
    out = pl.pallas_call(
        _decoder_kernel,
        out_shape=jax.ShapeDtypeStruct((Mp, Vp), jnp.float32),
        grid=(Mp // tm, Vp // tv),
        in_specs=[
            pl.BlockSpec((tm, H), lambda i, j: (i, 0)),    # h tokens
            pl.BlockSpec((H, tv), lambda i, j: (0, j)),    # W_emb^T vocab tile
            pl.BlockSpec((1, tv), lambda i, j: (0, j)),    # bias vocab tile
        ],
        out_specs=pl.BlockSpec((tm, tv), lambda i, j: (i, j)),
        compiler_params=pltpu.CompilerParams(
            dimension_semantics=("parallel", "parallel"),   # megacore on v7x
            vmem_limit_bytes=_vmem_limit(d_tile_bytes),
        ),
        cost_estimate=pl.CostEstimate(
            flops=2 * Mp * H * Vp,
            transcendentals=0,
            bytes_accessed=dec_elem * (Mp * H + H * Vp) + _F32 * (Vp + Mp * Vp),
        ),
    )(h, dec_wt, dec_b_2)

    # strip M/V padding and restore (B, S, V)
    return out[:M, :V].reshape(B, S, V)


# ----------------------------- reference & test -------------------------------


def _reference(x, w1, b1, gamma, beta, dec_w, dec_b):
    h = jnp.einsum("bsh,oh->bso", x, w1) + b1
    h = _gelu_erf(h)
    mean = jnp.mean(h, axis=-1, keepdims=True)
    var = jnp.mean((h - mean) ** 2, axis=-1, keepdims=True)
    h = (h - mean) / jnp.sqrt(var + _LN_EPS)
    h = h * gamma + beta
    return jnp.einsum("bsh,vh->bsv", h, dec_w) + dec_b


if __name__ == "__main__":
    # hidden_size=768 is hardcoded in the module; small batch/seq, and a vocab
    # size that is NOT a multiple of the tile to exercise the padding path.
    B, S, H, V = 2, 8, 768, 500

    key = jax.random.PRNGKey(0)
    k_x, k_w1, k_b1, k_emb = jax.random.split(key, 4)

    x = jax.random.normal(k_x, (B, S, H), dtype=jnp.float32)
    # BertPredictionHeadTransform.dense: Linear(768, 768), weight stored (out, in)
    w1 = jax.random.normal(k_w1, (H, H), dtype=jnp.float32) * 0.02
    b1 = jax.random.normal(k_b1, (H,), dtype=jnp.float32) * 0.02
    # BertLayerNorm(768)
    gamma = jnp.ones((H,), dtype=jnp.float32)
    beta = jnp.zeros((H,), dtype=jnp.float32)
    # decoder weight tied to embedding matrix (V, H); bias initialized to zeros
    dec_w = jax.random.normal(k_emb, (V, H), dtype=jnp.float32) * 0.02
    dec_b = jnp.zeros((V,), dtype=jnp.float32)

    out = bert_lm_prediction_head(x, w1, b1, gamma, beta, dec_w, dec_b)
    out = jax.block_until_ready(out)

    ref = _reference(x, w1, b1, gamma, beta, dec_w, dec_b)
    assert out.shape == (B, S, V)
    assert jnp.allclose(out, ref, atol=2e-4, rtol=2e-4), "mismatch vs reference"

    print("KERNEL_OK")
</pallas_src>

<mosaic_0001>
module attributes {stable_mosaic.version = 11 : i64} {
  func.func @_transform_kernel(%arg0: i32, %arg1: memref<16x768xf32, #tpu.memory_space<vmem>>, %arg2: memref<768x768xf32, #tpu.memory_space<vmem>>, %arg3: memref<1x768xf32, #tpu.memory_space<vmem>>, %arg4: memref<1x768xf32, #tpu.memory_space<vmem>>, %arg5: memref<1x768xf32, #tpu.memory_space<vmem>>, %arg6: memref<16x768xf32, #tpu.memory_space<vmem>>) attributes {dimension_semantics = [#tpu.dimension_semantics<parallel>], iteration_bounds = array<i64: 1>, scalar_prefetch = 0 : i64, scratch_operands = 0 : i64, tpu.core_type = #tpu.core_type<tc>, window_params = [{transform_indices = @transform_0, window_bounds = array<i64: 16, 768>}, {pipeline_mode = #tpu.pipeline_mode<synchronous>, transform_indices = @transform_1, window_bounds = array<i64: 768, 768>}, {pipeline_mode = #tpu.pipeline_mode<synchronous>, transform_indices = @transform_2, window_bounds = array<i64: 1, 768>}, {pipeline_mode = #tpu.pipeline_mode<synchronous>, transform_indices = @transform_3, window_bounds = array<i64: 1, 768>}, {pipeline_mode = #tpu.pipeline_mode<synchronous>, transform_indices = @transform_4, window_bounds = array<i64: 1, 768>}, {transform_indices = @transform_5, window_bounds = array<i64: 16, 768>}]} {
    %c0 = arith.constant 0 : index
    %c0_0 = arith.constant 0 : index
    %0 = vector.load %arg1[%c0, %c0_0] : memref<16x768xf32, #tpu.memory_space<vmem>>, vector<16x768xf32>
    %c0_1 = arith.constant 0 : index
    %c0_2 = arith.constant 0 : index
    %1 = vector.load %arg2[%c0_1, %c0_2] : memref<768x768xf32, #tpu.memory_space<vmem>>, vector<768x768xf32>
    %cst = arith.constant dense<0.000000e+00> : vector<16x768xf32>
    %2 = tpu.matmul %0, %1, %cst {dimension_numbers = #tpu.dot_dimension_numbers<[1], [0], [0], [1], [0, 0, 1, 1], [], []>} : vector<16x768xf32>, vector<768x768xf32>, vector<16x768xf32> -> vector<16x768xf32>
    %c0_3 = arith.constant 0 : index
    %c0_4 = arith.constant 0 : index
    %3 = vector.load %arg3[%c0_3, %c0_4] : memref<1x768xf32, #tpu.memory_space<vmem>>, vector<1x768xf32>
    %4 = vector.broadcast %3 : vector<1x768xf32> to vector<16x768xf32>
    %5 = arith.addf %2, %4 : vector<16x768xf32>
    %cst_5 = arith.constant 5.000000e-01 : f32
    %6 = vector.broadcast %cst_5 : f32 to vector<16x768xf32>
    %7 = arith.mulf %5, %6 : vector<16x768xf32>
    %cst_6 = arith.constant 1.41421354 : f32
    %8 = vector.broadcast %cst_6 : f32 to vector<16x768xf32>
    %9 = arith.divf %5, %8 : vector<16x768xf32>
    %10 = math.erf %9 : vector<16x768xf32>
    %cst_7 = arith.constant 1.000000e+00 : f32
    %11 = vector.broadcast %cst_7 : f32 to vector<16x768xf32>
    %12 = arith.addf %11, %10 : vector<16x768xf32>
    %13 = arith.mulf %7, %12 : vector<16x768xf32>
    %cst_8 = arith.constant dense<0.000000e+00> : vector<16xf32>
    %14 = vector.multi_reduction <add>, %13, %cst_8 [1] : vector<16x768xf32> to vector<16xf32>
    %15 = vector.shape_cast %14 : vector<16xf32> to vector<16x1xf32>
    %cst_9 = arith.constant 7.680000e+02 : f32
    %16 = vector.broadcast %cst_9 : f32 to vector<16x1xf32>
    %17 = arith.divf %15, %16 : vector<16x1xf32>
    %18 = vector.broadcast %17 : vector<16x1xf32> to vector<16x768xf32>
    %19 = arith.subf %13, %18 : vector<16x768xf32>
    %20 = arith.mulf %19, %19 : vector<16x768xf32>
    %cst_10 = arith.constant dense<0.000000e+00> : vector<16xf32>
    %21 = vector.multi_reduction <add>, %20, %cst_10 [1] : vector<16x768xf32> to vector<16xf32>
    %22 = vector.shape_cast %21 : vector<16xf32> to vector<16x1xf32>
    %cst_11 = arith.constant 7.680000e+02 : f32
    %23 = vector.broadcast %cst_11 : f32 to vector<16x1xf32>
    %24 = arith.divf %22, %23 : vector<16x1xf32>
    %cst_12 = arith.constant 9.99999996E-13 : f32
    %25 = vector.broadcast %cst_12 : f32 to vector<16x1xf32>
    %26 = arith.addf %24, %25 : vector<16x1xf32>
    %27 = math.rsqrt %26 : vector<16x1xf32>
    %28 = vector.broadcast %27 : vector<16x1xf32> to vector<16x768xf32>
    %29 = arith.mulf %19, %28 : vector<16x768xf32>
    %c0_13 = arith.constant 0 : index
    %c0_14 = arith.constant 0 : index
    %30 = vector.load %arg4[%c0_13, %c0_14] : memref<1x768xf32, #tpu.memory_space<vmem>>, vector<1x768xf32>
    %31 = vector.broadcast %30 : vector<1x768xf32> to vector<16x768xf32>
    %32 = arith.mulf %29, %31 : vector<16x768xf32>
    %c0_15 = arith.constant 0 : index
    %c0_16 = arith.constant 0 : index
    %33 = vector.load %arg5[%c0_15, %c0_16] : memref<1x768xf32, #tpu.memory_space<vmem>>, vector<1x768xf32>
    %34 = vector.broadcast %33 : vector<1x768xf32> to vector<16x768xf32>
    %35 = arith.addf %32, %34 : vector<16x768xf32>
    %c0_17 = arith.constant 0 : index
    %c0_18 = arith.constant 0 : index
    %36 = vector.load %arg6[%c0_17, %c0_18] : memref<16x768xf32, #tpu.memory_space<vmem>>, vector<16x768xf32>
    tpu.vector_store %arg6[%c0_17, %c0_18], %35 {strides = array<i32>} : memref<16x768xf32, #tpu.memory_space<vmem>>, vector<16x768xf32>,
    return
  }
  func.func @transform_0(%arg0: i32) -> (i32, i32) {
    %c0_i32 = arith.constant 0 : i32
    %c0_i32_0 = arith.constant 0 : i32
    return %arg0, %c0_i32 : i32, i32
  }
  func.func @transform_1(%arg0: i32) -> (i32, i32) {
    %c0_i32 = arith.constant 0 : i32
    %c0_i32_0 = arith.constant 0 : i32
    %c0_i32_1 = arith.constant 0 : i32
    return %c0_i32, %c0_i32_0 : i32, i32
  }
  func.func @transform_2(%arg0: i32) -> (i32, i32) {
    %c0_i32 = arith.constant 0 : i32
    %c0_i32_0 = arith.constant 0 : i32
    %c0_i32_1 = arith.constant 0 : i32
    return %c0_i32, %c0_i32_0 : i32, i32
  }
  func.func @transform_3(%arg0: i32) -> (i32, i32) {
    %c0_i32 = arith.constant 0 : i32
    %c0_i32_0 = arith.constant 0 : i32
    %c0_i32_1 = arith.constant 0 : i32
    return %c0_i32, %c0_i32_0 : i32, i32
  }
  func.func @transform_4(%arg0: i32) -> (i32, i32) {
    %c0_i32 = arith.constant 0 : i32
    %c0_i32_0 = arith.constant 0 : i32
    %c0_i32_1 = arith.constant 0 : i32
    return %c0_i32, %c0_i32_0 : i32, i32
  }
  func.func @transform_5(%arg0: i32) -> (i32, i32) {
    %c0_i32 = arith.constant 0 : i32
    %c0_i32_0 = arith.constant 0 : i32
    return %arg0, %c0_i32 : i32, i32
  }
}

</mosaic_0001>

<llo_original>
// kernel: tpu_custom_call.1
$region0: #{tpu_custom_call.1}
  #allocation0 [shape = 'u32[]', space=smem, size = 0x4, offset = 0x4, fixed_abs, tag = 'smem constant byte address 0x4 - core index']
  #allocation1 [shape = 'u32[144,128]{1,0:T(1,128)}', space=vmem, size = 0x12000, scoped, tag = 'internal scratch']
  %s0 = inlined_call_operand.hbm [shape: f32[16,768], index: 0, kind: input, shape index: {}]
  %s1 = inlined_call_operand.hbm [shape: f32[768,768], index: 1, kind: input, shape index: {}]
  %s2 = inlined_call_operand.hbm [shape: f32[1,768], index: 2, kind: input, shape index: {}]
  %s3 = inlined_call_operand.hbm [shape: f32[1,768], index: 3, kind: input, shape index: {}]
  %s4 = inlined_call_operand.hbm [shape: f32[1,768], index: 4, kind: input, shape index: {}]
  %s5 = inlined_call_operand.hbm [shape: f32[16,768], index: 5, kind: output, shape index: {}]
  %s6 = sld [smem:[#allocation0]]
  $region50: #{tpu_custom_call.1} parent=0
    _
  %s8 = ssub.s32 1, %s6
  %s9 = scalar_select 0, %s8, %s6
  $region1: #{tpu_custom_call.1} parent=0
    #allocation2 [shape = 'u8[49152]{0}', space=vmem, size = 0xc000, scoped, tag = 'input window, operand 0, single buffered']
    #allocation3 [shape = 's32[1]{0}', space=sflag, size = 0x4, scoped, tag = 'scoped memory for tpu_custom_call.1']
    #allocation4 [shape = 's32[1]{0}', space=sflag, size = 0x4, scoped, tag = 'scoped memory for tpu_custom_call.1']
    #allocation5 [shape = 'u8[2359296]{0}', space=vmem, size = 0x240000, scoped, tag = 'input window, operand 1, single buffered']
    #allocation6 [shape = 's32[1]{0}', space=sflag, size = 0x4, scoped, tag = 'scoped memory for tpu_custom_call.1']
    #allocation7 [shape = 'u8[3072]{0}', space=vmem, size = 0xc00, scoped, tag = 'input window, operand 2, single buffered']
    #allocation8 [shape = 'u8[3072]{0}', space=vmem, size = 0xc00, scoped, tag = 'input window, operand 3, single buffered']
    #allocation9 [shape = 's32[1]{0}', space=sflag, size = 0x4, scoped, tag = 'scoped memory for tpu_custom_call.1']
    #allocation10 [shape = 'u8[3072]{0}', space=vmem, size = 0xc00, scoped, tag = 'input window, operand 4, single buffered']
    #allocation11 [shape = 'u8[49152]{0}', space=vmem, size = 0xc000, scoped, tag = 'output window, operand 0, single buffered']
    %10 = vsyncpa [#allocation3], 0
    %11 = vsyncpa [#allocation6], 0
    %12 = vsyncpa [#allocation9], 0
    %13 = vsyncpa [#allocation4], 0
    // Predicated region
    $region2: #{tpu_custom_call.1} parent=1 // pred_check
      _
    $region3: #{tpu_custom_call.1} parent=1 // pred_check_branch
      %15 = sbr.rel (0) target = $region5
    $region4: #{tpu_custom_call.1} parent=1 // pred_region
      %s17 = ssub.s32 1536, 1536
      %18 = vsyncadd [#allocation3], %s17
      %s19 = sshll.u32 [#allocation2], 4
      %s20 = int_to_ptr.vmem [resolvable:$true] %s19
      %25 = dma.hbm_to_vmem [thread:$0]  %s0, 1536, %s20, [#allocation3], 768, 768, 48
    $region5: #{tpu_custom_call.1} parent=1 // pred_fallthru
      _
    // Predicated region
    $region6: #{tpu_custom_call.1} parent=1 // pred_check
      _
    $region7: #{tpu_custom_call.1} parent=1 // pred_check_branch
      %27 = sbr.rel (0) target = $region9
    $region8: #{tpu_custom_call.1} parent=1 // pred_region
      %s29 = ssub.s32 73728, 73728
      %30 = vsyncadd [#allocation6], %s29
      %s31 = sshll.u32 [#allocation5], 4
      %s32 = int_to_ptr.vmem [resolvable:$true] %s31
      %37 = dma.hbm_to_vmem [thread:$0]  %s1, 73728, %s32, [#allocation6], 768, 768, 48
    $region9: #{tpu_custom_call.1} parent=1 // pred_fallthru
      _
    // Predicated region
    $region10: #{tpu_custom_call.1} parent=1 // pred_check
      _
    $region11: #{tpu_custom_call.1} parent=1 // pred_check_branch
      %39 = sbr.rel (0) target = $region13
    $region12: #{tpu_custom_call.1} parent=1 // pred_region
      %s41 = ssub.s32 96, 96
      %42 = vsyncadd [#allocation6], %s41
      %s44 = sshll.u32 [#allocation7], 4
      %s45 = int_to_ptr.vmem [resolvable:$true] %s44
      %47 = dma.hbm_to_vmem [thread:$0]  %s2, 96, %s45, [#allocation6]
    $region13: #{tpu_custom_call.1} parent=1 // pred_fallthru
      _
    // Predicated region
    $region14: #{tpu_custom_call.1} parent=1 // pred_check
      _
    $region15: #{tpu_custom_call.1} parent=1 // pred_check_branch
      %49 = sbr.rel (0) target = $region17
    $region16: #{tpu_custom_call.1} parent=1 // pred_region
      %s51 = ssub.s32 96, 96
      %52 = vsyncadd [#allocation9], %s51
      %s54 = sshll.u32 [#allocation8], 4
      %s55 = int_to_ptr.vmem [resolvable:$true] %s54
      %57 = dma.hbm_to_vmem [thread:$0]  %s3, 96, %s55, [#allocation9]
    $region17: #{tpu_custom_call.1} parent=1 // pred_fallthru
      _
    // Predicated region
    $region18: #{tpu_custom_call.1} parent=1 // pred_check
      _
    $region19: #{tpu_custom_call.1} parent=1 // pred_check_branch
      %59 = sbr.rel (0) target = $region21
    $region20: #{tpu_custom_call.1} parent=1 // pred_region
      %s61 = ssub.s32 96, 96
      %62 = vsyncadd [#allocation9], %s61
      %s64 = sshll.u32 [#allocation10], 4
      %s65 = int_to_ptr.vmem [resolvable:$true] %s64
      %67 = dma.hbm_to_vmem [thread:$0]  %s4, 96, %s65, [#allocation9]
    $region21: #{tpu_custom_call.1} parent=1 // pred_fallthru
      _
    // Predicated region
    $region22: #{tpu_custom_call.1} parent=1 // pred_check
      _
    $region23: #{tpu_custom_call.1} parent=1 // pred_check_branch
      %69 = sbr.rel (0) target = $region25
    $region24: #{tpu_custom_call.1} parent=1 // pred_region
      %70 = dma.done [#allocation3], 1536
    $region25: #{tpu_custom_call.1} parent=1 // pred_fallthru
      _
    // Predicated region
    $region26: #{tpu_custom_call.1} parent=1 // pred_check
      _
    $region27: #{tpu_custom_call.1} parent=1 // pred_check_branch
      %72 = sbr.rel (0) target = $region29
    $region28: #{tpu_custom_call.1} parent=1 // pred_region
      %73 = dma.done [#allocation6], 73728
    $region29: #{tpu_custom_call.1} parent=1 // pred_fallthru
      _
    // Predicated region
    $region30: #{tpu_custom_call.1} parent=1 // pred_check
      _
    $region31: #{tpu_custom_call.1} parent=1 // pred_check_branch
      %75 = sbr.rel (0) target = $region33
    $region32: #{tpu_custom_call.1} parent=1 // pred_region
      %76 = dma.done [#allocation6], 96
    $region33: #{tpu_custom_call.1} parent=1 // pred_fallthru
      _
    // Predicated region
    $region34: #{tpu_custom_call.1} parent=1 // pred_check
      _
    $region35: #{tpu_custom_call.1} parent=1 // pred_check_branch
      %78 = sbr.rel (0) target = $region37
    $region36: #{tpu_custom_call.1} parent=1 // pred_region
      %79 = dma.done [#allocation9], 96
    $region37: #{tpu_custom_call.1} parent=1 // pred_fallthru
      _
    // Predicated region
    $region38: #{tpu_custom_call.1} parent=1 // pred_check
      _
    $region39: #{tpu_custom_call.1} parent=1 // pred_check_branch
      %81 = sbr.rel (0) target = $region41
    $region40: #{tpu_custom_call.1} parent=1 // pred_region
      %82 = dma.done [#allocation9], 96
    $region41: #{tpu_custom_call.1} parent=1 // pred_fallthru
      _
    %v83 = vld [vmem:[#allocation2] sm:$0xff]
    %v84 = vld [vmem:[#allocation2 + $0x8] sm:$0xff]
    %v85 = vld [vmem:[#allocation2 + $0x10] sm:$0xff]
    %v86 = vld [vmem:[#allocation2 + $0x18] sm:$0xff]
    %v87 = vld [vmem:[#allocation2 + $0x20] sm:$0xff]
    %v88 = vld [vmem:[#allocation2 + $0x28] sm:$0xff]
    %v89 = vld [vmem:[#allocation2 + $0x30] sm:$0xff]
    %v90 = vld [vmem:[#allocation2 + $0x38] sm:$0xff]
    %v91 = vld [vmem:[#allocation2 + $0x40] sm:$0xff]
    %v92 = vld [vmem:[#allocation2 + $0x48] sm:$0xff]
    %v93 = vld [vmem:[#allocation2 + $0x50] sm:$0xff]
    %v94 = vld [vmem:[#allocation2 + $0x58] sm:$0xff]
    %v95 = vld [vmem:[#allocation5] sm:$0xff]
    %v96 = vld [vmem:[#allocation5 + $0x8] sm:$0xff]
    %v97 = vld [vmem:[#allocation5 + $0x10] sm:$0xff]
    %v98 = vld [vmem:[#allocation5 + $0x18] sm:$0xff]
    %v99 = vld [vmem:[#allocation5 + $0x20] sm:$0xff]
    %v100 = vld [vmem:[#allocation5 + $0x28] sm:$0xff]
    %v101 = vld [vmem:[#allocation5 + $0x30] sm:$0xff]
    %v102 = vld [vmem:[#allocation5 + $0x38] sm:$0xff]
    %v103 = vld [vmem:[#allocation5 + $0x40] sm:$0xff]
    %v104 = vld [vmem:[#allocation5 + $0x48] sm:$0xff]
    %v105 = vld [vmem:[#allocation5 + $0x50] sm:$0xff]
    %v106 = vld [vmem:[#allocation5 + $0x58] sm:$0xff]
    %v107 = vld [vmem:[#allocation5 + $0x60] sm:$0xff]
    %v108 = vld [vmem:[#allocation5 + $0x68] sm:$0xff]
    %v109 = vld [vmem:[#allocation5 + $0x70] sm:$0xff]
    %v110 = vld [vmem:[#allocation5 + $0x78] sm:$0xff]
    %v111 = vld [vmem:[#allocation5 + $0x80] sm:$0xff]
    %v112 = vld [vmem:[#allocation5 + $0x88] sm:$0xff]
    %v113 = vld [vmem:[#allocation5 + $0x90] sm:$0xff]
    %v114 = vld [vmem:[#allocation5 + $0x98] sm:$0xff]
    %v115 = vld [vmem:[#allocation5 + $0xa0] sm:$0xff]
    %v116 = vld [vmem:[#allocation5 + $0xa8] sm:$0xff]
    %v117 = vld [vmem:[#allocation5 + $0xb0] sm:$0xff]
    %v118 = vld [vmem:[#allocation5 + $0xb8] sm:$0xff]
    %v119 = vld [vmem:[#allocation5 + $0xc0] sm:$0xff]
    %v120 = vld [vmem:[#allocation5 + $0xc8] sm:$0xff]
    %v121 = vld [vmem:[#allocation5 + $0xd0] sm:$0xff]
    %v122 = vld [vmem:[#allocation5 + $0xd8] sm:$0xff]
    %v123 = vld [vmem:[#allocation5 + $0xe0] sm:$0xff]
    %v124 = vld [vmem:[#allocation5 + $0xe8] sm:$0xff]
    %v125 = vld [vmem:[#allocation5 + $0xf0] sm:$0xff]
    %v126 = vld [vmem:[#allocation5 + $0xf8] sm:$0xff]
    %v127 = vld [vmem:[#allocation5 + $0x100] sm:$0xff]
    %v128 = vld [vmem:[#allocation5 + $0x108] sm:$0xff]
    %v129 = vld [vmem:[#allocation5 + $0x110] sm:$0xff]
    %v130 = vld [vmem:[#allocation5 + $0x118] sm:$0xff]
    %v131 = vld [vmem:[#allocation5 + $0x120] sm:$0xff]
    %v132 = vld [vmem:[#allocation5 + $0x128] sm:$0xff]
    %v133 = vld [vmem:[#allocation5 + $0x130] sm:$0xff]
    %v134 = vld [vmem:[#allocation5 + $0x138] sm:$0xff]
    %v135 = vld [vmem:[#allocation5 + $0x140] sm:$0xff]
    %v136 = vld [vmem:[#allocation5 + $0x148] sm:$0xff]
    %v137 = vld [vmem:[#allocation5 + $0x150] sm:$0xff]
    %v138 = vld [vmem:[#allocation5 + $0x158] sm:$0xff]
    %v139 = vld [vmem:[#allocation5 + $0x160] sm:$0xff]
    %v140 = vld [vmem:[#allocation5 + $0x168] sm:$0xff]
    %v141 = vld [vmem:[#allocation5 + $0x170] sm:$0xff]
    %v142 = vld [vmem:[#allocation5 + $0x178] sm:$0xff]
    %v143 = vld [vmem:[#allocation5 + $0x180] sm:$0xff]
    %v144 = vld [vmem:[#allocation5 + $0x188] sm:$0xff]
    %v145 = vld [vmem:[#allocation5 + $0x190] sm:$0xff]
    %v146 = vld [vmem:[#allocation5 + $0x198] sm:$0xff]
    %v147 = vld [vmem:[#allocation5 + $0x1a0] sm:$0xff]
    %v148 = vld [vmem:[#allocation5 + $0x1a8] sm:$0xff]
    %v149 = vld [vmem:[#allocation5 + $0x1b0] sm:$0xff]
    %v150 = vld [vmem:[#allocation5 + $0x1b8] sm:$0xff]
    %v151 = vld [vmem:[#allocation5 + $0x1c0] sm:$0xff]
    %v152 = vld [vmem:[#allocation5 + $0x1c8] sm:$0xff]
    %v153 = vld [vmem:[#allocation5 + $0x1d0] sm:$0xff]
    %v154 = vld [vmem:[#allocation5 + $0x1d8] sm:$0xff]
    %v155 = vld [vmem:[#allocation5 + $0x1e0] sm:$0xff]
    %v156 = vld [vmem:[#allocation5 + $0x1e8] sm:$0xff]
    %v157 = vld [vmem:[#allocation5 + $0x1f0] sm:$0xff]
    %v158 = vld [vmem:[#allocation5 + $0x1f8] sm:$0xff]
    %v159 = vld [vmem:[#allocation5 + $0x200] sm:$0xff]
    %v160 = vld [vmem:[#allocation5 + $0x208] sm:$0xff]
    %v161 = vld [vmem:[#allocation5 + $0x210] sm:$0xff]
    %v162 = vld [vmem:[#allocation5 + $0x218] sm:$0xff]
    %v163 = vld [vmem:[#allocation5 + $0x220] sm:$0xff]
    %v164 = vld [vmem:[#allocation5 + $0x228] sm:$0xff]
    %v165 = vld [vmem:[#allocation5 + $0x230] sm:$0xff]
    %v166 = vld [vmem:[#allocation5 + $0x238] sm:$0xff]
    %v167 = vld [vmem:[#allocation5 + $0x240] sm:$0xff]
    %v168 = vld [vmem:[#allocation5 + $0x248] sm:$0xff]
    %v169 = vld [vmem:[#allocation5 + $0x250] sm:$0xff]
    %v170 = vld [vmem:[#allocation5 + $0x258] sm:$0xff]
    %v171 = vld [vmem:[#allocation5 + $0x260] sm:$0xff]
    %v172 = vld [vmem:[#allocation5 + $0x268] sm:$0xff]
    %v173 = vld [vmem:[#allocation5 + $0x270] sm:$0xff]
    %v174 = vld [vmem:[#allocation5 + $0x278] sm:$0xff]
    %v175 = vld [vmem:[#allocation5 + $0x280] sm:$0xff]
    %v176 = vld [vmem:[#allocation5 + $0x288] sm:$0xff]
    %v177 = vld [vmem:[#allocation5 + $0x290] sm:$0xff]
    %v178 = vld [vmem:[#allocation5 + $0x298] sm:$0xff]
    %v179 = vld [vmem:[#allocation5 + $0x2a0] sm:$0xff]
    %v180 = vld [vmem:[#allocation5 + $0x2a8] sm:$0xff]
    %v181 = vld [vmem:[#allocation5 + $0x2b0] sm:$0xff]
    %v182 = vld [vmem:[#allocation5 + $0x2b8] sm:$0xff]
    %v183 = vld [vmem:[#allocation5 + $0x2c0] sm:$0xff]
    %v184 = vld [vmem:[#allocation5 + $0x2c8] sm:$0xff]
    %v185 = vld [vmem:[#allocation5 + $0x2d0] sm:$0xff]
    %v186 = vld [vmem:[#allocation5 + $0x2d8] sm:$0xff]
    %v187 = vld [vmem:[#allocation5 + $0x2e0] sm:$0xff]
    %v188 = vld [vmem:[#allocation5 + $0x2e8] sm:$0xff]
    %v189 = vld [vmem:[#allocation5 + $0x2f0] sm:$0xff]
    %v190 = vld [vmem:[#allocation5 + $0x2f8] sm:$0xff]
    %v191 = vld [vmem:[#allocation5 + $0x300] sm:$0xff]
    %v192 = vld [vmem:[#allocation5 + $0x308] sm:$0xff]
    %v193 = vld [vmem:[#allocation5 + $0x310] sm:$0xff]
    %v194 = vld [vmem:[#allocation5 + $0x318] sm:$0xff]
    %v195 = vld [vmem:[#allocation5 + $0x320] sm:$0xff]
    %v196 = vld [vmem:[#allocation5 + $0x328] sm:$0xff]
    %v197 = vld [vmem:[#allocation5 + $0x330] sm:$0xff]
    %v198 = vld [vmem:[#allocation5 + $0x338] sm:$0xff]
    %v199 = vld [vmem:[#allocation5 + $0x340] sm:$0xff]
    %v200 = vld [vmem:[#allocation5 + $0x348] sm:$0xff]
    %v201 = vld [vmem:[#allocation5 + $0x350] sm:$0xff]
    %v202 = vld [vmem:[#allocation5 + $0x358] sm:$0xff]
    %v203 = vld [vmem:[#allocation5 + $0x360] sm:$0xff]
    %v204 = vld [vmem:[#allocation5 + $0x368] sm:$0xff]
    %v205 = vld [vmem:[#allocation5 + $0x370] sm:$0xff]
    %v206 = vld [vmem:[#allocation5 + $0x378] sm:$0xff]
    %v207 = vld [vmem:[#allocation5 + $0x380] sm:$0xff]
    %v208 = vld [vmem:[#allocation5 + $0x388] sm:$0xff]
    %v209 = vld [vmem:[#allocation5 + $0x390] sm:$0xff]
    %v210 = vld [vmem:[#allocation5 + $0x398] sm:$0xff]
    %v211 = vld [vmem:[#allocation5 + $0x3a0] sm:$0xff]
    %v212 = vld [vmem:[#allocation5 + $0x3a8] sm:$0xff]
    %v213 = vld [vmem:[#allocation5 + $0x3b0] sm:$0xff]
    %v214 = vld [vmem:[#allocation5 + $0x3b8] sm:$0xff]
    %v215 = vld [vmem:[#allocation5 + $0x3c0] sm:$0xff]
    %v216 = vld [vmem:[#allocation5 + $0x3c8] sm:$0xff]
    %v217 = vld [vmem:[#allocation5 + $0x3d0] sm:$0xff]
    %v218 = vld [vmem:[#allocation5 + $0x3d8] sm:$0xff]
    %v219 = vld [vmem:[#allocation5 + $0x3e0] sm:$0xff]
    %v220 = vld [vmem:[#allocation5 + $0x3e8] sm:$0xff]
    %v221 = vld [vmem:[#allocation5 + $0x3f0] sm:$0xff]
    %v222 = vld [vmem:[#allocation5 + $0x3f8] sm:$0xff]
    %v223 = vld [vmem:[#allocation5 + $0x400] sm:$0xff]
    %v224 = vld [vmem:[#allocation5 + $0x408] sm:$0xff]
    %v225 = vld [vmem:[#allocation5 + $0x410] sm:$0xff]
    %v226 = vld [vmem:[#allocation5 + $0x418] sm:$0xff]
    %v227 = vld [vmem:[#allocation5 + $0x420] sm:$0xff]
    %v228 = vld [vmem:[#allocation5 + $0x428] sm:$0xff]
    %v229 = vld [vmem:[#allocation5 + $0x430] sm:$0xff]
    %v230 = vld [vmem:[#allocation5 + $0x438] sm:$0xff]
    %v231 = vld [vmem:[#allocation5 + $0x440] sm:$0xff]
    %v232 = vld [vmem:[#allocation5 + $0x448] sm:$0xff]
    %v233 = vld [vmem:[#allocation5 + $0x450] sm:$0xff]
    %v234 = vld [vmem:[#allocation5 + $0x458] sm:$0xff]
    %v235 = vld [vmem:[#allocation5 + $0x460] sm:$0xff]
    %v236 = vld [vmem:[#allocation5 + $0x468] sm:$0xff]
    %v237 = vld [vmem:[#allocation5 + $0x470] sm:$0xff]
    %v238 = vld [vmem:[#allocation5 + $0x478] sm:$0xff]
    %v239 = vld [vmem:[#allocation5 + $0x480] sm:$0xff]
    %v240 = vld [vmem:[#allocation5 + $0x488] sm:$0xff]
    %v241 = vld [vmem:[#allocation5 + $0x490] sm:$0xff]
    %v242 = vld [vmem:[#allocation5 + $0x498] sm:$0xff]
    %v243 = vld [vmem:[#allocation5 + $0x4a0] sm:$0xff]
    %v244 = vld [vmem:[#allocation5 + $0x4a8] sm:$0xff]
    %v245 = vld [vmem:[#allocation5 + $0x4b0] sm:$0xff]
    %v246 = vld [vmem:[#allocation5 + $0x4b8] sm:$0xff]
    %v247 = vld [vmem:[#allocation5 + $0x4c0] sm:$0xff]
    %v248 = vld [vmem:[#allocation5 + $0x4c8] sm:$0xff]
    %v249 = vld [vmem:[#allocation5 + $0x4d0] sm:$0xff]
    %v250 = vld [vmem:[#allocation5 + $0x4d8] sm:$0xff]
    %v251 = vld [vmem:[#allocation5 + $0x4e0] sm:$0xff]
    %v252 = vld [vmem:[#allocation5 + $0x4e8] sm:$0xff]
    %v253 = vld [vmem:[#allocation5 + $0x4f0] sm:$0xff]
    %v254 = vld [vmem:[#allocation5 + $0x4f8] sm:$0xff]
    %v255 = vld [vmem:[#allocation5 + $0x500] sm:$0xff]
    %v256 = vld [vmem:[#allocation5 + $0x508] sm:$0xff]
    %v257 = vld [vmem:[#allocation5 + $0x510] sm:$0xff]
    %v258 = vld [vmem:[#allocation5 + $0x518] sm:$0xff]
    %v259 = vld [vmem:[#allocation5 + $0x520] sm:$0xff]
    %v260 = vld [vmem:[#allocation5 + $0x528] sm:$0xff]
    %v261 = vld [vmem:[#allocation5 + $0x530] sm:$0xff]
    %v262 = vld [vmem:[#allocation5 + $0x538] sm:$0xff]
    %v263 = vld [vmem:[#allocation5 + $0x540] sm:$0xff]
    %v264 = vld [vmem:[#allocation5 + $0x548] sm:$0xff]
    %v265 = vld [vmem:[#allocation5 + $0x550] sm:$0xff]
    %v266 = vld [vmem:[#allocation5 + $0x558] sm:$0xff]
    %v267 = vld [vmem:[#allocation5 + $0x560] sm:$0xff]
    %v268 = vld [vmem:[#allocation5 + $0x568] sm:$0xff]
    %v269 = vld [vmem:[#allocation5 + $0x570] sm:$0xff]
    %v270 = vld [vmem:[#allocation5 + $0x578] sm:$0xff]
    %v271 = vld [vmem:[#allocation5 + $0x580] sm:$0xff]
    %v272 = vld [vmem:[#allocation5 + $0x588] sm:$0xff]
    %v273 = vld [vmem:[#allocation5 + $0x590] sm:$0xff]
    %v274 = vld [vmem:[#allocation5 + $0x598] sm:$0xff]
    %v275 = vld [vmem:[#allocation5 + $0x5a0] sm:$0xff]
    %v276 = vld [vmem:[#allocation5 + $0x5a8] sm:$0xff]
    %v277 = vld [vmem:[#allocation5 + $0x5b0] sm:$0xff]
    %v278 = vld [vmem:[#allocation5 + $0x5b8] sm:$0xff]
    %v279 = vld [vmem:[#allocation5 + $0x5c0] sm:$0xff]
    %v280 = vld [vmem:[#allocation5 + $0x5c8] sm:$0xff]
    %v281 = vld [vmem:[#allocation5 + $0x5d0] sm:$0xff]
    %v282 = vld [vmem:[#allocation5 + $0x5d8] sm:$0xff]
    %v283 = vld [vmem:[#allocation5 + $0x5e0] sm:$0xff]
    %v284 = vld [vmem:[#allocation5 + $0x5e8] sm:$0xff]
    %v285 = vld [vmem:[#allocation5 + $0x5f0] sm:$0xff]
    %v286 = vld [vmem:[#allocation5 + $0x5f8] sm:$0xff]
    %v287 = vld [vmem:[#allocation5 + $0x600] sm:$0xff]
    %v288 = vld [vmem:[#allocation5 + $0x608] sm:$0xff]
    %v289 = vld [vmem:[#allocation5 + $0x610] sm:$0xff]
    %v290 = vld [vmem:[#allocation5 + $0x618] sm:$0xff]
    %v291 = vld [vmem:[#allocation5 + $0x620] sm:$0xff]
    %v292 = vld [vmem:[#allocation5 + $0x628] sm:$0xff]
    %v293 = vld [vmem:[#allocation5 + $0x630] sm:$0xff]
    %v294 = vld [vmem:[#allocation5 + $0x638] sm:$0xff]
    %v295 = vld [vmem:[#allocation5 + $0x640] sm:$0xff]
    %v296 = vld [vmem:[#allocation5 + $0x648] sm:$0xff]
    %v297 = vld [vmem:[#allocation5 + $0x650] sm:$0xff]
    %v298 = vld [vmem:[#allocation5 + $0x658] sm:$0xff]
    %v299 = vld [vmem:[#allocation5 + $0x660] sm:$0xff]
    %v300 = vld [vmem:[#allocation5 + $0x668] sm:$0xff]
    %v301 = vld [vmem:[#allocation5 + $0x670] sm:$0xff]
    %v302 = vld [vmem:[#allocation5 + $0x678] sm:$0xff]
    %v303 = vld [vmem:[#allocation5 + $0x680] sm:$0xff]
    %v304 = vld [vmem:[#allocation5 + $0x688] sm:$0xff]
    %v305 = vld [vmem:[#allocation5 + $0x690] sm:$0xff]
    %v306 = vld [vmem:[#allocation5 + $0x698] sm:$0xff]
    %v307 = vld [vmem:[#allocation5 + $0x6a0] sm:$0xff]
    %v308 = vld [vmem:[#allocation5 + $0x6a8] sm:$0xff]
    %v309 = vld [vmem:[#allocation5 + $0x6b0] sm:$0xff]
    %v310 = vld [vmem:[#allocation5 + $0x6b8] sm:$0xff]
    %v311 = vld [vmem:[#allocation5 + $0x6c0] sm:$0xff]
    %v312 = vld [vmem:[#allocation5 + $0x6c8] sm:$0xff]
    %v313 = vld [vmem:[#allocation5 + $0x6d0] sm:$0xff]
    %v314 = vld [vmem:[#allocation5 + $0x6d8] sm:$0xff]
    %v315 = vld [vmem:[#allocation5 + $0x6e0] sm:$0xff]
    %v316 = vld [vmem:[#allocation5 + $0x6e8] sm:$0xff]
    %v317 = vld [vmem:[#allocation5 + $0x6f0] sm:$0xff]
    %v318 = vld [vmem:[#allocation5 + $0x6f8] sm:$0xff]
    %v319 = vld [vmem:[#allocation5 + $0x700] sm:$0xff]
    %v320 = vld [vmem:[#allocation5 + $0x708] sm:$0xff]
    %v321 = vld [vmem:[#allocation5 + $0x710] sm:$0xff]
    %v322 = vld [vmem:[#allocation5 + $0x718] sm:$0xff]
    %v323 = vld [vmem:[#allocation5 + $0x720] sm:$0xff]
    %v324 = vld [vmem:[#allocation5 + $0x728] sm:$0xff]
    %v325 = vld [vmem:[#allocation5 + $0x730] sm:$0xff]
    %v326 = vld [vmem:[#allocation5 + $0x738] sm:$0xff]
    %v327 = vld [vmem:[#allocation5 + $0x740] sm:$0xff]
    %v328 = vld [vmem:[#allocation5 + $0x748] sm:$0xff]
    %v329 = vld [vmem:[#allocation5 + $0x750] sm:$0xff]
    %v330 = vld [vmem:[#allocation5 + $0x758] sm:$0xff]
    %v331 = vld [vmem:[#allocation5 + $0x760] sm:$0xff]
    %v332 = vld [vmem:[#allocation5 + $0x768] sm:$0xff]
    %v333 = vld [vmem:[#allocation5 + $0x770] sm:$0xff]
    %v334 = vld [vmem:[#allocation5 + $0x778] sm:$0xff]
    %v335 = vld [vmem:[#allocation5 + $0x780] sm:$0xff]
    %v336 = vld [vmem:[#allocation5 + $0x788] sm:$0xff]
    %v337 = vld [vmem:[#allocation5 + $0x790] sm:$0xff]
    %v338 = vld [vmem:[#allocation5 + $0x798] sm:$0xff]
    %v339 = vld [vmem:[#allocation5 + $0x7a0] sm:$0xff]
    %v340 = vld [vmem:[#allocation5 + $0x7a8] sm:$0xff]
    %v341 = vld [vmem:[#allocation5 + $0x7b0] sm:$0xff]
    %v342 = vld [vmem:[#allocation5 + $0x7b8] sm:$0xff]
    %v343 = vld [vmem:[#allocation5 + $0x7c0] sm:$0xff]
    %v344 = vld [vmem:[#allocation5 + $0x7c8] sm:$0xff]
    %v345 = vld [vmem:[#allocation5 + $0x7d0] sm:$0xff]
    %v346 = vld [vmem:[#allocation5 + $0x7d8] sm:$0xff]
    %v347 = vld [vmem:[#allocation5 + $0x7e0] sm:$0xff]
    %v348 = vld [vmem:[#allocation5 + $0x7e8] sm:$0xff]
    %v349 = vld [vmem:[#allocation5 + $0x7f0] sm:$0xff]
    %v350 = vld [vmem:[#allocation5 + $0x7f8] sm:$0xff]
    %v351 = vld [vmem:[#allocation5 + $0x800] sm:$0xff]
    %v352 = vld [vmem:[#allocation5 + $0x808] sm:$0xff]
    %v353 = vld [vmem:[#allocation5 + $0x810] sm:$0xff]
    %v354 = vld [vmem:[#allocation5 + $0x818] sm:$0xff]
    %v355 = vld [vmem:[#allocation5 + $0x820] sm:$0xff]
    %v356 = vld [vmem:[#allocation5 + $0x828] sm:$0xff]
    %v357 = vld [vmem:[#allocation5 + $0x830] sm:$0xff]
    %v358 = vld [vmem:[#allocation5 + $0x838] sm:$0xff]
    %v359 = vld [vmem:[#allocation5 + $0x840] sm:$0xff]
    %v360 = vld [vmem:[#allocation5 + $0x848] sm:$0xff]
    %v361 = vld [vmem:[#allocation5 + $0x850] sm:$0xff]
    %v362 = vld [vmem:[#allocation5 + $0x858] sm:$0xff]
    %v363 = vld [vmem:[#allocation5 + $0x860] sm:$0xff]
    %v364 = vld [vmem:[#allocation5 + $0x868] sm:$0xff]
    %v365 = vld [vmem:[#allocation5 + $0x870] sm:$0xff]
    %v366 = vld [vmem:[#allocation5 + $0x878] sm:$0xff]
    %v367 = vld [vmem:[#allocation5 + $0x880] sm:$0xff]
    %v368 = vld [vmem:[#allocation5 + $0x888] sm:$0xff]
    %v369 = vld [vmem:[#allocation5 + $0x890] sm:$0xff]
    %v370 = vld [vmem:[#allocation5 + $0x898] sm:$0xff]
    %v371 = vld [vmem:[#allocation5 + $0x8a0] sm:$0xff]
    %v372 = vld [vmem:[#allocation5 + $0x8a8] sm:$0xff]
    %v373 = vld [vmem:[#allocation5 + $0x8b0] sm:$0xff]
    %v374 = vld [vmem:[#allocation5 + $0x8b8] sm:$0xff]
    %v375 = vld [vmem:[#allocation5 + $0x8c0] sm:$0xff]
    %v376 = vld [vmem:[#allocation5 + $0x8c8] sm:$0xff]
    %v377 = vld [vmem:[#allocation5 + $0x8d0] sm:$0xff]
    %v378 = vld [vmem:[#allocation5 + $0x8d8] sm:$0xff]
    %v379 = vld [vmem:[#allocation5 + $0x8e0] sm:$0xff]
    %v380 = vld [vmem:[#allocation5 + $0x8e8] sm:$0xff]
    %v381 = vld [vmem:[#allocation5 + $0x8f0] sm:$0xff]
    %v382 = vld [vmem:[#allocation5 + $0x8f8] sm:$0xff]
    %v383 = vld [vmem:[#allocation5 + $0x900] sm:$0xff]
    %v384 = vld [vmem:[#allocation5 + $0x908] sm:$0xff]
    %v385 = vld [vmem:[#allocation5 + $0x910] sm:$0xff]
    %v386 = vld [vmem:[#allocation5 + $0x918] sm:$0xff]
    %v387 = vld [vmem:[#allocation5 + $0x920] sm:$0xff]
    %v388 = vld [vmem:[#allocation5 + $0x928] sm:$0xff]
    %v389 = vld [vmem:[#allocation5 + $0x930] sm:$0xff]
    %v390 = vld [vmem:[#allocation5 + $0x938] sm:$0xff]
    %v391 = vld [vmem:[#allocation5 + $0x940] sm:$0xff]
    %v392 = vld [vmem:[#allocation5 + $0x948] sm:$0xff]
    %v393 = vld [vmem:[#allocation5 + $0x950] sm:$0xff]
    %v394 = vld [vmem:[#allocation5 + $0x958] sm:$0xff]
    %v395 = vld [vmem:[#allocation5 + $0x960] sm:$0xff]
    %v396 = vld [vmem:[#allocation5 + $0x968] sm:$0xff]
    %v397 = vld [vmem:[#allocation5 + $0x970] sm:$0xff]
    %v398 = vld [vmem:[#allocation5 + $0x978] sm:$0xff]
    %v399 = vld [vmem:[#allocation5 + $0x980] sm:$0xff]
    %v400 = vld [vmem:[#allocation5 + $0x988] sm:$0xff]
    %v401 = vld [vmem:[#allocation5 + $0x990] sm:$0xff]
    %v402 = vld [vmem:[#allocation5 + $0x998] sm:$0xff]
    %v403 = vld [vmem:[#allocation5 + $0x9a0] sm:$0xff]
    %v404 = vld [vmem:[#allocation5 + $0x9a8] sm:$0xff]
    %v405 = vld [vmem:[#allocation5 + $0x9b0] sm:$0xff]
    %v406 = vld [vmem:[#allocation5 + $0x9b8] sm:$0xff]
    %v407 = vld [vmem:[#allocation5 + $0x9c0] sm:$0xff]
    %v408 = vld [vmem:[#allocation5 + $0x9c8] sm:$0xff]
    %v409 = vld [vmem:[#allocation5 + $0x9d0] sm:$0xff]
    %v410 = vld [vmem:[#allocation5 + $0x9d8] sm:$0xff]
    %v411 = vld [vmem:[#allocation5 + $0x9e0] sm:$0xff]
    %v412 = vld [vmem:[#allocation5 + $0x9e8] sm:$0xff]
    %v413 = vld [vmem:[#allocation5 + $0x9f0] sm:$0xff]
    %v414 = vld [vmem:[#allocation5 + $0x9f8] sm:$0xff]
    %v415 = vld [vmem:[#allocation5 + $0xa00] sm:$0xff]
    %v416 = vld [vmem:[#allocation5 + $0xa08] sm:$0xff]
    %v417 = vld [vmem:[#allocation5 + $0xa10] sm:$0xff]
    %v418 = vld [vmem:[#allocation5 + $0xa18] sm:$0xff]
    %v419 = vld [vmem:[#allocation5 + $0xa20] sm:$0xff]
    %v420 = vld [vmem:[#allocation5 + $0xa28] sm:$0xff]
    %v421 = vld [vmem:[#allocation5 + $0xa30] sm:$0xff]
    %v422 = vld [vmem:[#allocation5 + $0xa38] sm:$0xff]
    %v423 = vld [vmem:[#allocation5 + $0xa40] sm:$0xff]
    %v424 = vld [vmem:[#allocation5 + $0xa48] sm:$0xff]
    %v425 = vld [vmem:[#allocation5 + $0xa50] sm:$0xff]
    %v426 = vld [vmem:[#allocation5 + $0xa58] sm:$0xff]
    %v427 = vld [vmem:[#allocation5 + $0xa60] sm:$0xff]
    %v428 = vld [vmem:[#allocation5 + $0xa68] sm:$0xff]
    %v429 = vld [vmem:[#allocation5 + $0xa70] sm:$0xff]
    %v430 = vld [vmem:[#allocation5 + $0xa78] sm:$0xff]
    %v431 = vld [vmem:[#allocation5 + $0xa80] sm:$0xff]
    %v432 = vld [vmem:[#allocation5 + $0xa88] sm:$0xff]
    %v433 = vld [vmem:[#allocation5 + $0xa90] sm:$0xff]
    %v434 = vld [vmem:[#allocation5 + $0xa98] sm:$0xff]
    %v435 = vld [vmem:[#allocation5 + $0xaa0] sm:$0xff]
    %v436 = vld [vmem:[#allocation5 + $0xaa8] sm:$0xff]
    %v437 = vld [vmem:[#allocation5 + $0xab0] sm:$0xff]
    %v438 = vld [vmem:[#allocation5 + $0xab8] sm:$0xff]
    %v439 = vld [vmem:[#allocation5 + $0xac0] sm:$0xff]
    %v440 = vld [vmem:[#allocation5 + $0xac8] sm:$0xff]
    %v441 = vld [vmem:[#allocation5 + $0xad0] sm:$0xff]
    %v442 = vld [vmem:[#allocation5 + $0xad8] sm:$0xff]
    %v443 = vld [vmem:[#allocation5 + $0xae0] sm:$0xff]
    %v444 = vld [vmem:[#allocation5 + $0xae8] sm:$0xff]
    %v445 = vld [vmem:[#allocation5 + $0xaf0] sm:$0xff]
    %v446 = vld [vmem:[#allocation5 + $0xaf8] sm:$0xff]
    %v447 = vld [vmem:[#allocation5 + $0xb00] sm:$0xff]
    %v448 = vld [vmem:[#allocation5 + $0xb08] sm:$0xff]
    %v449 = vld [vmem:[#allocation5 + $0xb10] sm:$0xff]
    %v450 = vld [vmem:[#allocation5 + $0xb18] sm:$0xff]
    %v451 = vld [vmem:[#allocation5 + $0xb20] sm:$0xff]
    %v452 = vld [vmem:[#allocation5 + $0xb28] sm:$0xff]
    %v453 = vld [vmem:[#allocation5 + $0xb30] sm:$0xff]
    %v454 = vld [vmem:[#allocation5 + $0xb38] sm:$0xff]
    %v455 = vld [vmem:[#allocation5 + $0xb40] sm:$0xff]
    %v456 = vld [vmem:[#allocation5 + $0xb48] sm:$0xff]
    %v457 = vld [vmem:[#allocation5 + $0xb50] sm:$0xff]
    %v458 = vld [vmem:[#allocation5 + $0xb58] sm:$0xff]
    %v459 = vld [vmem:[#allocation5 + $0xb60] sm:$0xff]
    %v460 = vld [vmem:[#allocation5 + $0xb68] sm:$0xff]
    %v461 = vld [vmem:[#allocation5 + $0xb70] sm:$0xff]
    %v462 = vld [vmem:[#allocation5 + $0xb78] sm:$0xff]
    %v463 = vld [vmem:[#allocation5 + $0xb80] sm:$0xff]
    %v464 = vld [vmem:[#allocation5 + $0xb88] sm:$0xff]
    %v465 = vld [vmem:[#allocation5 + $0xb90] sm:$0xff]
    %v466 = vld [vmem:[#allocation5 + $0xb98] sm:$0xff]
    %v467 = vld [vmem:[#allocation5 + $0xba0] sm:$0xff]
    %v468 = vld [vmem:[#allocation5 + $0xba8] sm:$0xff]
    %v469 = vld [vmem:[#allocation5 + $0xbb0] sm:$0xff]
    %v470 = vld [vmem:[#allocation5 + $0xbb8] sm:$0xff]
    %v471 = vld [vmem:[#allocation5 + $0xbc0] sm:$0xff]
    %v472 = vld [vmem:[#allocation5 + $0xbc8] sm:$0xff]
    %v473 = vld [vmem:[#allocation5 + $0xbd0] sm:$0xff]
    %v474 = vld [vmem:[#allocation5 + $0xbd8] sm:$0xff]
    %v475 = vld [vmem:[#allocation5 + $0xbe0] sm:$0xff]
    %v476 = vld [vmem:[#allocation5 + $0xbe8] sm:$0xff]
    %v477 = vld [vmem:[#allocation5 + $0xbf0] sm:$0xff]
    %v478 = vld [vmem:[#allocation5 + $0xbf8] sm:$0xff]
    %v479 = vld [vmem:[#allocation5 + $0xc00] sm:$0xff]
    %v480 = vld [vmem:[#allocation5 + $0xc08] sm:$0xff]
    %v481 = vld [vmem:[#allocation5 + $0xc10] sm:$0xff]
    %v482 = vld [vmem:[#allocation5 + $0xc18] sm:$0xff]
    %v483 = vld [vmem:[#allocation5 + $0xc20] sm:$0xff]
    %v484 = vld [vmem:[#allocation5 + $0xc28] sm:$0xff]
    %v485 = vld [vmem:[#allocation5 + $0xc30] sm:$0xff]
    %v486 = vld [vmem:[#allocation5 + $0xc38] sm:$0xff]
    %v487 = vld [vmem:[#allocation5 + $0xc40] sm:$0xff]
    %v488 = vld [vmem:[#allocation5 + $0xc48] sm:$0xff]
    %v489 = vld [vmem:[#allocation5 + $0xc50] sm:$0xff]
    %v490 = vld [vmem:[#allocation5 + $0xc58] sm:$0xff]
    %v491 = vld [vmem:[#allocation5 + $0xc60] sm:$0xff]
    %v492 = vld [vmem:[#allocation5 + $0xc68] sm:$0xff]
    %v493 = vld [vmem:[#allocation5 + $0xc70] sm:$0xff]
    %v494 = vld [vmem:[#allocation5 + $0xc78] sm:$0xff]
    %v495 = vld [vmem:[#allocation5 + $0xc80] sm:$0xff]
    %v496 = vld [vmem:[#allocation5 + $0xc88] sm:$0xff]
    %v497 = vld [vmem:[#allocation5 + $0xc90] sm:$0xff]
    %v498 = vld [vmem:[#allocation5 + $0xc98] sm:$0xff]
    %v499 = vld [vmem:[#allocation5 + $0xca0] sm:$0xff]
    %v500 = vld [vmem:[#allocation5 + $0xca8] sm:$0xff]
    %v501 = vld [vmem:[#allocation5 + $0xcb0] sm:$0xff]
    %v502 = vld [vmem:[#allocation5 + $0xcb8] sm:$0xff]
    %v503 = vld [vmem:[#allocation5 + $0xcc0] sm:$0xff]
    %v504 = vld [vmem:[#allocation5 + $0xcc8] sm:$0xff]
    %v505 = vld [vmem:[#allocation5 + $0xcd0] sm:$0xff]
    %v506 = vld [vmem:[#allocation5 + $0xcd8] sm:$0xff]
    %v507 = vld [vmem:[#allocation5 + $0xce0] sm:$0xff]
    %v508 = vld [vmem:[#allocation5 + $0xce8] sm:$0xff]
    %v509 = vld [vmem:[#allocation5 + $0xcf0] sm:$0xff]
    %v510 = vld [vmem:[#allocation5 + $0xcf8] sm:$0xff]
    %v511 = vld [vmem:[#allocation5 + $0xd00] sm:$0xff]
    %v512 = vld [vmem:[#allocation5 + $0xd08] sm:$0xff]
    %v513 = vld [vmem:[#allocation5 + $0xd10] sm:$0xff]
    %v514 = vld [vmem:[#allocation5 + $0xd18] sm:$0xff]
    %v515 = vld [vmem:[#allocation5 + $0xd20] sm:$0xff]
    %v516 = vld [vmem:[#allocation5 + $0xd28] sm:$0xff]
    %v517 = vld [vmem:[#allocation5 + $0xd30] sm:$0xff]
    %v518 = vld [vmem:[#allocation5 + $0xd38] sm:$0xff]
    %v519 = vld [vmem:[#allocation5 + $0xd40] sm:$0xff]
    %v520 = vld [vmem:[#allocation5 + $0xd48] sm:$0xff]
    %v521 = vld [vmem:[#allocation5 + $0xd50] sm:$0xff]
    %v522 = vld [vmem:[#allocation5 + $0xd58] sm:$0xff]
    %v523 = vld [vmem:[#allocation5 + $0xd60] sm:$0xff]
    %v524 = vld [vmem:[#allocation5 + $0xd68] sm:$0xff]
    %v525 = vld [vmem:[#allocation5 + $0xd70] sm:$0xff]
    %v526 = vld [vmem:[#allocation5 + $0xd78] sm:$0xff]
    %v527 = vld [vmem:[#allocation5 + $0xd80] sm:$0xff]
    %v528 = vld [vmem:[#allocation5 + $0xd88] sm:$0xff]
    %v529 = vld [vmem:[#allocation5 + $0xd90] sm:$0xff]
    %v530 = vld [vmem:[#allocation5 + $0xd98] sm:$0xff]
    %v531 = vld [vmem:[#allocation5 + $0xda0] sm:$0xff]
    %v532 = vld [vmem:[#allocation5 + $0xda8] sm:$0xff]
    %v533 = vld [vmem:[#allocation5 + $0xdb0] sm:$0xff]
    %v534 = vld [vmem:[#allocation5 + $0xdb8] sm:$0xff]
    %v535 = vld [vmem:[#allocation5 + $0xdc0] sm:$0xff]
    %v536 = vld [vmem:[#allocation5 + $0xdc8] sm:$0xff]
    %v537 = vld [vmem:[#allocation5 + $0xdd0] sm:$0xff]
    %v538 = vld [vmem:[#allocation5 + $0xdd8] sm:$0xff]
    %v539 = vld [vmem:[#allocation5 + $0xde0] sm:$0xff]
    %v540 = vld [vmem:[#allocation5 + $0xde8] sm:$0xff]
    %v541 = vld [vmem:[#allocation5 + $0xdf0] sm:$0xff]
    %v542 = vld [vmem:[#allocation5 + $0xdf8] sm:$0xff]
    %v543 = vld [vmem:[#allocation5 + $0xe00] sm:$0xff]
    %v544 = vld [vmem:[#allocation5 + $0xe08] sm:$0xff]
    %v545 = vld [vmem:[#allocation5 + $0xe10] sm:$0xff]
    %v546 = vld [vmem:[#allocation5 + $0xe18] sm:$0xff]
    %v547 = vld [vmem:[#allocation5 + $0xe20] sm:$0xff]
    %v548 = vld [vmem:[#allocation5 + $0xe28] sm:$0xff]
    %v549 = vld [vmem:[#allocation5 + $0xe30] sm:$0xff]
    %v550 = vld [vmem:[#allocation5 + $0xe38] sm:$0xff]
    %v551 = vld [vmem:[#allocation5 + $0xe40] sm:$0xff]
    %v552 = vld [vmem:[#allocation5 + $0xe48] sm:$0xff]
    %v553 = vld [vmem:[#allocation5 + $0xe50] sm:$0xff]
    %v554 = vld [vmem:[#allocation5 + $0xe58] sm:$0xff]
    %v555 = vld [vmem:[#allocation5 + $0xe60] sm:$0xff]
    %v556 = vld [vmem:[#allocation5 + $0xe68] sm:$0xff]
    %v557 = vld [vmem:[#allocation5 + $0xe70] sm:$0xff]
    %v558 = vld [vmem:[#allocation5 + $0xe78] sm:$0xff]
    %v559 = vld [vmem:[#allocation5 + $0xe80] sm:$0xff]
    %v560 = vld [vmem:[#allocation5 + $0xe88] sm:$0xff]
    %v561 = vld [vmem:[#allocation5 + $0xe90] sm:$0xff]
    %v562 = vld [vmem:[#allocation5 + $0xe98] sm:$0xff]
    %v563 = vld [vmem:[#allocation5 + $0xea0] sm:$0xff]
    %v564 = vld [vmem:[#allocation5 + $0xea8] sm:$0xff]
    %v565 = vld [vmem:[#allocation5 + $0xeb0] sm:$0xff]
    %v566 = vld [vmem:[#allocation5 + $0xeb8] sm:$0xff]
    %v567 = vld [vmem:[#allocation5 + $0xec0] sm:$0xff]
    %v568 = vld [vmem:[#allocation5 + $0xec8] sm:$0xff]
    %v569 = vld [vmem:[#allocation5 + $0xed0] sm:$0xff]
    %v570 = vld [vmem:[#allocation5 + $0xed8] sm:$0xff]
    %v571 = vld [vmem:[#allocation5 + $0xee0] sm:$0xff]
    %v572 = vld [vmem:[#allocation5 + $0xee8] sm:$0xff]
    %v573 = vld [vmem:[#allocation5 + $0xef0] sm:$0xff]
    %v574 = vld [vmem:[#allocation5 + $0xef8] sm:$0xff]
    %v575 = vld [vmem:[#allocation5 + $0xf00] sm:$0xff]
    %v576 = vld [vmem:[#allocation5 + $0xf08] sm:$0xff]
    %v577 = vld [vmem:[#allocation5 + $0xf10] sm:$0xff]
    %v578 = vld [vmem:[#allocation5 + $0xf18] sm:$0xff]
    %v579 = vld [vmem:[#allocation5 + $0xf20] sm:$0xff]
    %v580 = vld [vmem:[#allocation5 + $0xf28] sm:$0xff]
    %v581 = vld [vmem:[#allocation5 + $0xf30] sm:$0xff]
    %v582 = vld [vmem:[#allocation5 + $0xf38] sm:$0xff]
    %v583 = vld [vmem:[#allocation5 + $0xf40] sm:$0xff]
    %v584 = vld [vmem:[#allocation5 + $0xf48] sm:$0xff]
    %v585 = vld [vmem:[#allocation5 + $0xf50] sm:$0xff]
    %v586 = vld [vmem:[#allocation5 + $0xf58] sm:$0xff]
    %v587 = vld [vmem:[#allocation5 + $0xf60] sm:$0xff]
    %v588 = vld [vmem:[#allocation5 + $0xf68] sm:$0xff]
    %v589 = vld [vmem:[#allocation5 + $0xf70] sm:$0xff]
    %v590 = vld [vmem:[#allocation5 + $0xf78] sm:$0xff]
    %v591 = vld [vmem:[#allocation5 + $0xf80] sm:$0xff]
    %v592 = vld [vmem:[#allocation5 + $0xf88] sm:$0xff]
    %v593 = vld [vmem:[#allocation5 + $0xf90] sm:$0xff]
    %v594 = vld [vmem:[#allocation5 + $0xf98] sm:$0xff]
    %v595 = vld [vmem:[#allocation5 + $0xfa0] sm:$0xff]
    %v596 = vld [vmem:[#allocation5 + $0xfa8] sm:$0xff]
    %v597 = vld [vmem:[#allocation5 + $0xfb0] sm:$0xff]
    %v598 = vld [vmem:[#allocation5 + $0xfb8] sm:$0xff]
    %v599 = vld [vmem:[#allocation5 + $0xfc0] sm:$0xff]
    %v600 = vld [vmem:[#allocation5 + $0xfc8] sm:$0xff]
    %v601 = vld [vmem:[#allocation5 + $0xfd0] sm:$0xff]
    %v602 = vld [vmem:[#allocation5 + $0xfd8] sm:$0xff]
    %v603 = vld [vmem:[#allocation5 + $0xfe0] sm:$0xff]
    %v604 = vld [vmem:[#allocation5 + $0xfe8] sm:$0xff]
    %v605 = vld [vmem:[#allocation5 + $0xff0] sm:$0xff]
    %v606 = vld [vmem:[#allocation5 + $0xff8] sm:$0xff]
    %v607 = vld [vmem:[#allocation5 + $0x1000] sm:$0xff]
    %v608 = vld [vmem:[#allocation5 + $0x1008] sm:$0xff]
    %v609 = vld [vmem:[#allocation5 + $0x1010] sm:$0xff]
    %v610 = vld [vmem:[#allocation5 + $0x1018] sm:$0xff]
    %v611 = vld [vmem:[#allocation5 + $0x1020] sm:$0xff]
    %v612 = vld [vmem:[#allocation5 + $0x1028] sm:$0xff]
    %v613 = vld [vmem:[#allocation5 + $0x1030] sm:$0xff]
    %v614 = vld [vmem:[#allocation5 + $0x1038] sm:$0xff]
    %v615 = vld [vmem:[#allocation5 + $0x1040] sm:$0xff]
    %v616 = vld [vmem:[#allocation5 + $0x1048] sm:$0xff]
    %v617 = vld [vmem:[#allocation5 + $0x1050] sm:$0xff]
    %v618 = vld [vmem:[#allocation5 + $0x1058] sm:$0xff]
    %v619 = vld [vmem:[#allocation5 + $0x1060] sm:$0xff]
    %v620 = vld [vmem:[#allocation5 + $0x1068] sm:$0xff]
    %v621 = vld [vmem:[#allocation5 + $0x1070] sm:$0xff]
    %v622 = vld [vmem:[#allocation5 + $0x1078] sm:$0xff]
    %v623 = vld [vmem:[#allocation5 + $0x1080] sm:$0xff]
    %v624 = vld [vmem:[#allocation5 + $0x1088] sm:$0xff]
    %v625 = vld [vmem:[#allocation5 + $0x1090] sm:$0xff]
    %v626 = vld [vmem:[#allocation5 + $0x1098] sm:$0xff]
    %v627 = vld [vmem:[#allocation5 + $0x10a0] sm:$0xff]
    %v628 = vld [vmem:[#allocation5 + $0x10a8] sm:$0xff]
    %v629 = vld [vmem:[#allocation5 + $0x10b0] sm:$0xff]
    %v630 = vld [vmem:[#allocation5 + $0x10b8] sm:$0xff]
    %v631 = vld [vmem:[#allocation5 + $0x10c0] sm:$0xff]
    %v632 = vld [vmem:[#allocation5 + $0x10c8] sm:$0xff]
    %v633 = vld [vmem:[#allocation5 + $0x10d0] sm:$0xff]
    %v634 = vld [vmem:[#allocation5 + $0x10d8] sm:$0xff]
    %v635 = vld [vmem:[#allocation5 + $0x10e0] sm:$0xff]
    %v636 = vld [vmem:[#allocation5 + $0x10e8] sm:$0xff]
    %v637 = vld [vmem:[#allocation5 + $0x10f0] sm:$0xff]
    %v638 = vld [vmem:[#allocation5 + $0x10f8] sm:$0xff]
    %v639 = vld [vmem:[#allocation5 + $0x1100] sm:$0xff]
    %v640 = vld [vmem:[#allocation5 + $0x1108] sm:$0xff]
    %v641 = vld [vmem:[#allocation5 + $0x1110] sm:$0xff]
    %v642 = vld [vmem:[#allocation5 + $0x1118] sm:$0xff]
    %v643 = vld [vmem:[#allocation5 + $0x1120] sm:$0xff]
    %v644 = vld [vmem:[#allocation5 + $0x1128] sm:$0xff]
    %v645 = vld [vmem:[#allocation5 + $0x1130] sm:$0xff]
    %v646 = vld [vmem:[#allocation5 + $0x1138] sm:$0xff]
    %v647 = vld [vmem:[#allocation5 + $0x1140] sm:$0xff]
    %v648 = vld [vmem:[#allocation5 + $0x1148] sm:$0xff]
    %v649 = vld [vmem:[#allocation5 + $0x1150] sm:$0xff]
    %v650 = vld [vmem:[#allocation5 + $0x1158] sm:$0xff]
    %v651 = vld [vmem:[#allocation5 + $0x1160] sm:$0xff]
    %v652 = vld [vmem:[#allocation5 + $0x1168] sm:$0xff]
    %v653 = vld [vmem:[#allocation5 + $0x1170] sm:$0xff]
    %v654 = vld [vmem:[#allocation5 + $0x1178] sm:$0xff]
    %v655 = vld [vmem:[#allocation5 + $0x1180] sm:$0xff]
    %v656 = vld [vmem:[#allocation5 + $0x1188] sm:$0xff]
    %v657 = vld [vmem:[#allocation5 + $0x1190] sm:$0xff]
    %v658 = vld [vmem:[#allocation5 + $0x1198] sm:$0xff]
    %v659 = vld [vmem:[#allocation5 + $0x11a0] sm:$0xff]
    %v660 = vld [vmem:[#allocation5 + $0x11a8] sm:$0xff]
    %v661 = vld [vmem:[#allocation5 + $0x11b0] sm:$0xff]
    %v662 = vld [vmem:[#allocation5 + $0x11b8] sm:$0xff]
    %v663 = vld [vmem:[#allocation5 + $0x11c0] sm:$0xff]
    %v664 = vld [vmem:[#allocation5 + $0x11c8] sm:$0xff]
    %v665 = vld [vmem:[#allocation5 + $0x11d0] sm:$0xff]
    %v666 = vld [vmem:[#allocation5 + $0x11d8] sm:$0xff]
    %v667 = vld [vmem:[#allocation5 + $0x11e0] sm:$0xff]
    %v668 = vld [vmem:[#allocation5 + $0x11e8] sm:$0xff]
    %v669 = vld [vmem:[#allocation5 + $0x11f0] sm:$0xff]
    %v670 = vld [vmem:[#allocation5 + $0x11f8] sm:$0xff]
    %v671 = vld [vmem:[#allocation7] sm:$0x3f]
    %v673 = vlaneseq
    %v674 = vshrl.u32 %v673, 7
    %v675 = vsub.s32 0, %v674
    %v676 = vrot.slane %v671, %v675
    %v677 = vlaneseq
    %v678 = vshrl.u32 %v677, 7
    %v679 = vsub.s32 1, %v678
    %v680 = vrot.slane %v671, %v679
    %v681 = vlaneseq
    %v682 = vshrl.u32 %v681, 7
    %v683 = vsub.s32 2, %v682
    %v684 = vrot.slane %v671, %v683
    %v685 = vlaneseq
    %v686 = vshrl.u32 %v685, 7
    %v687 = vsub.s32 3, %v686
    %v688 = vrot.slane %v671, %v687
    %v689 = vlaneseq
    %v690 = vshrl.u32 %v689, 7
    %v691 = vsub.s32 4, %v690
    %v692 = vrot.slane %v671, %v691
    %v693 = vlaneseq
    %v694 = vshrl.u32 %v693, 7
    %v695 = vsub.s32 5, %v694
    %v696 = vrot.slane %v671, %v695
    %703 = vmatprep.subr.mxu0 %v186
    %704 = vmatpush1.msra.mxu0 %v185
    %705 = vmatprep.subr.mxu0 %v180
    %706 = vmatpush1.msra.mxu0 %v179
    %707 = vmatprep.subr.mxu0 %v174
    %708 = vmatpush1.msra.mxu0 %v173
    %709 = vmatprep.subr.mxu0 %v168
    %710 = vmatpush1.msra.mxu0 %v167
    %711 = vmatprep.subr.mxu0 %v162
    %712 = vmatpush1.msra.mxu0 %v161
    %713 = vmatprep.subr.mxu0 %v156
    %714 = vmatpush1.msra.mxu0 %v155
    %715 = vmatprep.subr.mxu0 %v150
    %716 = vmatpush1.msra.mxu0 %v149
    %717 = vmatprep.subr.mxu0 %v144
    %718 = vmatpush1.msra.mxu0 %v143
    %719 = vmatprep.subr.mxu0 %v138
    %720 = vmatpush1.msra.mxu0 %v137
    %721 = vmatprep.subr.mxu0 %v132
    %722 = vmatpush1.msra.mxu0 %v131
    %723 = vmatprep.subr.mxu0 %v126
    %724 = vmatpush1.msra.mxu0 %v125
    %725 = vmatprep.subr.mxu0 %v120
    %726 = vmatpush1.msra.mxu0 %v119
    %727 = vmatprep.subr.mxu0 %v114
    %728 = vmatpush1.msra.mxu0 %v113
    %729 = vmatprep.subr.mxu0 %v108
    %730 = vmatpush1.msra.mxu0 %v107
    %731 = vmatprep.subr.mxu0 %v102
    %732 = vmatpush1.msra.mxu0 %v101
    %733 = vmatprep.subr.mxu0 %v96
    %734 = vmatpush1.msra.mxu0 %v95
    %735 = vmatprep.subr.mxu0 %v282
    %736 = vmatpush2.msra.mxu0 %v281
    %737 = vmatprep.subr.mxu0 %v276
    %738 = vmatpush2.msra.mxu0 %v275
    %739 = vmatprep.subr.mxu0 %v270
    %740 = vmatpush2.msra.mxu0 %v269
    %741 = vmatprep.subr.mxu0 %v264
    %742 = vmatpush2.msra.mxu0 %v263
    %743 = vmatprep.subr.mxu0 %v258
    %744 = vmatpush2.msra.mxu0 %v257
    %745 = vmatprep.subr.mxu0 %v252
    %746 = vmatpush2.msra.mxu0 %v251
    %747 = vmatprep.subr.mxu0 %v246
    %748 = vmatpush2.msra.mxu0 %v245
    %749 = vmatprep.subr.mxu0 %v240
    %750 = vmatpush2.msra.mxu0 %v239
    %751 = vmatprep.subr.mxu0 %v234
    %752 = vmatpush2.msra.mxu0 %v233
    %753 = vmatprep.subr.mxu0 %v228
    %754 = vmatpush2.msra.mxu0 %v227
    %755 = vmatprep.subr.mxu0 %v222
    %756 = vmatpush2.msra.mxu0 %v221
    %757 = vmatprep.subr.mxu0 %v216
    %758 = vmatpush2.msra.mxu0 %v215
    %759 = vmatprep.subr.mxu0 %v210
    %760 = vmatpush2.msra.mxu0 %v209
    %761 = vmatprep.subr.mxu0 %v204
    %762 = vmatpush2.msra.mxu0 %v203
    %763 = vmatprep.subr.mxu0 %v198
    %764 = vmatpush2.msra.mxu0 %v197
    %765 = vmatprep.subr.mxu0 %v192
    %766 = vmatpush2.msra.mxu0 %v191
    %767 = vmatprep.mubr.f32.mxu0 %v84
    %768 = vmatmul.mubr.f32.gmra.mxu0 %v83
    %v769 = vpop.f32.mrf.mxu0
    %v770 = vadd.f32 %v676, %v769
    %v771 = vpop.f32.mrf.mxu0
    %v772 = vadd.f32 %v680, %v771
    %773 = vmatprep.mubr.f32.mxu0 %v90
    %774 = vmatmul.mubr.f32.gmra.mxu0 %v89
    %v775 = vpop.f32.mrf.mxu0
    %v776 = vadd.f32 %v676, %v775
    %v777 = vpop.f32.mrf.mxu0
    %v778 = vadd.f32 %v680, %v777
    %779 = vdwg.mxu0
    %780 = vmatprep.subr.mxu0 %v378
    %781 = vmatpush1.msra.mxu0 %v377
    %782 = vmatprep.subr.mxu0 %v372
    %783 = vmatpush1.msra.mxu0 %v371
    %784 = vmatprep.subr.mxu0 %v366
    %785 = vmatpush1.msra.mxu0 %v365
    %786 = vmatprep.subr.mxu0 %v360
    %787 = vmatpush1.msra.mxu0 %v359
    %788 = vmatprep.subr.mxu0 %v354
    %789 = vmatpush1.msra.mxu0 %v353
    %790 = vmatprep.subr.mxu0 %v348
    %791 = vmatpush1.msra.mxu0 %v347
    %792 = vmatprep.subr.mxu0 %v342
    %793 = vmatpush1.msra.mxu0 %v341
    %794 = vmatprep.subr.mxu0 %v336
    %795 = vmatpush1.msra.mxu0 %v335
    %796 = vmatprep.subr.mxu0 %v330
    %797 = vmatpush1.msra.mxu0 %v329
    %798 = vmatprep.subr.mxu0 %v324
    %799 = vmatpush1.msra.mxu0 %v323
    %800 = vmatprep.subr.mxu0 %v318
    %801 = vmatpush1.msra.mxu0 %v317
    %802 = vmatprep.subr.mxu0 %v312
    %803 = vmatpush1.msra.mxu0 %v311
    %804 = vmatprep.subr.mxu0 %v306
    %805 = vmatpush1.msra.mxu0 %v305
    %806 = vmatprep.subr.mxu0 %v300
    %807 = vmatpush1.msra.mxu0 %v299
    %808 = vmatprep.subr.mxu0 %v294
    %809 = vmatpush1.msra.mxu0 %v293
    %810 = vmatprep.subr.mxu0 %v288
    %811 = vmatpush1.msra.mxu0 %v287
    %812 = vmatprep.subr.mxu0 %v474
    %813 = vmatpush2.msra.mxu0 %v473
    %814 = vmatprep.subr.mxu0 %v468
    %815 = vmatpush2.msra.mxu0 %v467
    %816 = vmatprep.subr.mxu0 %v462
    %817 = vmatpush2.msra.mxu0 %v461
    %818 = vmatprep.subr.mxu0 %v456
    %819 = vmatpush2.msra.mxu0 %v455
    %820 = vmatprep.subr.mxu0 %v450
    %821 = vmatpush2.msra.mxu0 %v449
    %822 = vmatprep.subr.mxu0 %v444
    %823 = vmatpush2.msra.mxu0 %v443
    %824 = vmatprep.subr.mxu0 %v438
    %825 = vmatpush2.msra.mxu0 %v437
    %826 = vmatprep.subr.mxu0 %v432
    %827 = vmatpush2.msra.mxu0 %v431
    %828 = vmatprep.subr.mxu0 %v426
    %829 = vmatpush2.msra.mxu0 %v425
    %830 = vmatprep.subr.mxu0 %v420
    %831 = vmatpush2.msra.mxu0 %v419
    %832 = vmatprep.subr.mxu0 %v414
    %833 = vmatpush2.msra.mxu0 %v413
    %834 = vmatprep.subr.mxu0 %v408
    %835 = vmatpush2.msra.mxu0 %v407
    %836 = vmatprep.subr.mxu0 %v402
    %837 = vmatpush2.msra.mxu0 %v401
    %838 = vmatprep.subr.mxu0 %v396
    %839 = vmatpush2.msra.mxu0 %v395
    %840 = vmatprep.subr.mxu0 %v390
    %841 = vmatpush2.msra.mxu0 %v389
    %842 = vmatprep.subr.mxu0 %v384
    %843 = vmatpush2.msra.mxu0 %v383
    %844 = vmatprep.mubr.f32.mxu0 %v86
    %845 = vmatmul.mubr.f32.gmra.mxu0 %v85
    %v846 = vpop.f32.mrf.mxu0
    %v847 = vadd.f32 %v770, %v846
    %v848 = vpop.f32.mrf.mxu0
    %v849 = vadd.f32 %v772, %v848
    %850 = vmatprep.mubr.f32.mxu0 %v92
    %851 = vmatmul.mubr.f32.gmra.mxu0 %v91
    %v852 = vpop.f32.mrf.mxu0
    %v853 = vadd.f32 %v776, %v852
    %v854 = vpop.f32.mrf.mxu0
    %v855 = vadd.f32 %v778, %v854
    %856 = vdwg.mxu0
    %857 = vmatprep.subr.mxu0 %v570
    %858 = vmatpush1.msra.mxu0 %v569
    %859 = vmatprep.subr.mxu0 %v564
    %860 = vmatpush1.msra.mxu0 %v563
    %861 = vmatprep.subr.mxu0 %v558
    %862 = vmatpush1.msra.mxu0 %v557
    %863 = vmatprep.subr.mxu0 %v552
    %864 = vmatpush1.msra.mxu0 %v551
    %865 = vmatprep.subr.mxu0 %v546
    %866 = vmatpush1.msra.mxu0 %v545
    %867 = vmatprep.subr.mxu0 %v540
    %868 = vmatpush1.msra.mxu0 %v539
    %869 = vmatprep.subr.mxu0 %v534
    %870 = vmatpush1.msra.mxu0 %v533
    %871 = vmatprep.subr.mxu0 %v528
    %872 = vmatpush1.msra.mxu0 %v527
    %873 = vmatprep.subr.mxu0 %v522
    %874 = vmatpush1.msra.mxu0 %v521
    %875 = vmatprep.subr.mxu0 %v516
    %876 = vmatpush1.msra.mxu0 %v515
    %877 = vmatprep.subr.mxu0 %v510
    %878 = vmatpush1.msra.mxu0 %v509
    %879 = vmatprep.subr.mxu0 %v504
    %880 = vmatpush1.msra.mxu0 %v503
    %881 = vmatprep.subr.mxu0 %v498
    %882 = vmatpush1.msra.mxu0 %v497
    %883 = vmatprep.subr.mxu0 %v492
    %884 = vmatpush1.msra.mxu0 %v491
    %885 = vmatprep.subr.mxu0 %v486
    %886 = vmatpush1.msra.mxu0 %v485
    %887 = vmatprep.subr.mxu0 %v480
    %888 = vmatpush1.msra.mxu0 %v479
    %889 = vmatprep.subr.mxu0 %v666
    %890 = vmatpush2.msra.mxu0 %v665
    %891 = vmatprep.subr.mxu0 %v660
    %892 = vmatpush2.msra.mxu0 %v659
    %893 = vmatprep.subr.mxu0 %v654
    %894 = vmatpush2.msra.mxu0 %v653
    %895 = vmatprep.subr.mxu0 %v648
    %896 = vmatpush2.msra.mxu0 %v647
    %897 = vmatprep.subr.mxu0 %v642
    %898 = vmatpush2.msra.mxu0 %v641
    %899 = vmatprep.subr.mxu0 %v636
    %900 = vmatpush2.msra.mxu0 %v635
    %901 = vmatprep.subr.mxu0 %v630
    %902 = vmatpush2.msra.mxu0 %v629
    %903 = vmatprep.subr.mxu0 %v624
    %904 = vmatpush2.msra.mxu0 %v623
    %905 = vmatprep.subr.mxu0 %v618
    %906 = vmatpush2.msra.mxu0 %v617
    %907 = vmatprep.subr.mxu0 %v612
    %908 = vmatpush2.msra.mxu0 %v611
    %909 = vmatprep.subr.mxu0 %v606
    %910 = vmatpush2.msra.mxu0 %v605
    %911 = vmatprep.subr.mxu0 %v600
    %912 = vmatpush2.msra.mxu0 %v599
    %913 = vmatprep.subr.mxu0 %v594
    %914 = vmatpush2.msra.mxu0 %v593
    %915 = vmatprep.subr.mxu0 %v588
    %916 = vmatpush2.msra.mxu0 %v587
    %917 = vmatprep.subr.mxu0 %v582
    %918 = vmatpush2.msra.mxu0 %v581
    %919 = vmatprep.subr.mxu0 %v576
    %920 = vmatpush2.msra.mxu0 %v575
    %921 = vmatprep.mubr.f32.mxu0 %v88
    %922 = vmatmul.mubr.f32.gmra.mxu0 %v87
    %v923 = vpop.f32.mrf.mxu0
    %v924 = vadd.f32 %v847, %v923
    %v925 = vpop.f32.mrf.mxu0
    %v926 = vadd.f32 %v849, %v925
    %927 = vmatprep.mubr.f32.mxu0 %v94
    %928 = vmatmul.mubr.f32.gmra.mxu0 %v93
    %v929 = vpop.f32.mrf.mxu0
    %v930 = vadd.f32 %v853, %v929
    %v931 = vpop.f32.mrf.mxu0
    %v932 = vadd.f32 %v855, %v931
    %933 = vdwg.mxu0
    %934 = vmatprep.subr.mxu0 %v188
    %935 = vmatpush1.msra.mxu0 %v187
    %936 = vmatprep.subr.mxu0 %v182
    %937 = vmatpush1.msra.mxu0 %v181
    %938 = vmatprep.subr.mxu0 %v176
    %939 = vmatpush1.msra.mxu0 %v175
    %940 = vmatprep.subr.mxu0 %v170
    %941 = vmatpush1.msra.mxu0 %v169
    %942 = vmatprep.subr.mxu0 %v164
    %943 = vmatpush1.msra.mxu0 %v163
    %944 = vmatprep.subr.mxu0 %v158
    %945 = vmatpush1.msra.mxu0 %v157
    %946 = vmatprep.subr.mxu0 %v152
    %947 = vmatpush1.msra.mxu0 %v151
    %948 = vmatprep.subr.mxu0 %v146
    %949 = vmatpush1.msra.mxu0 %v145
    %950 = vmatprep.subr.mxu0 %v140
    %951 = vmatpush1.msra.mxu0 %v139
    %952 = vmatprep.subr.mxu0 %v134
    %953 = vmatpush1.msra.mxu0 %v133
    %954 = vmatprep.subr.mxu0 %v128
    %955 = vmatpush1.msra.mxu0 %v127
    %956 = vmatprep.subr.mxu0 %v122
    %957 = vmatpush1.msra.mxu0 %v121
    %958 = vmatprep.subr.mxu0 %v116
    %959 = vmatpush1.msra.mxu0 %v115
    %960 = vmatprep.subr.mxu0 %v110
    %961 = vmatpush1.msra.mxu0 %v109
    %962 = vmatprep.subr.mxu0 %v104
    %963 = vmatpush1.msra.mxu0 %v103
    %964 = vmatprep.subr.mxu0 %v98
    %965 = vmatpush1.msra.mxu0 %v97
    %966 = vmatprep.subr.mxu0 %v284
    %967 = vmatpush2.msra.mxu0 %v283
    %968 = vmatprep.subr.mxu0 %v278
    %969 = vmatpush2.msra.mxu0 %v277
    %970 = vmatprep.subr.mxu0 %v272
    %971 = vmatpush2.msra.mxu0 %v271
    %972 = vmatprep.subr.mxu0 %v266
    %973 = vmatpush2.msra.mxu0 %v265
    %974 = vmatprep.subr.mxu0 %v260
    %975 = vmatpush2.msra.mxu0 %v259
    %976 = vmatprep.subr.mxu0 %v254
    %977 = vmatpush2.msra.mxu0 %v253
    %978 = vmatprep.subr.mxu0 %v248
    %979 = vmatpush2.msra.mxu0 %v247
    %980 = vmatprep.subr.mxu0 %v242
    %981 = vmatpush2.msra.mxu0 %v241
    %982 = vmatprep.subr.mxu0 %v236
    %983 = vmatpush2.msra.mxu0 %v235
    %984 = vmatprep.subr.mxu0 %v230
    %985 = vmatpush2.msra.mxu0 %v229
    %986 = vmatprep.subr.mxu0 %v224
    %987 = vmatpush2.msra.mxu0 %v223
    %988 = vmatprep.subr.mxu0 %v218
    %989 = vmatpush2.msra.mxu0 %v217
    %990 = vmatprep.subr.mxu0 %v212
    %991 = vmatpush2.msra.mxu0 %v211
    %992 = vmatprep.subr.mxu0 %v206
    %993 = vmatpush2.msra.mxu0 %v205
    %994 = vmatprep.subr.mxu0 %v200
    %995 = vmatpush2.msra.mxu0 %v199
    %996 = vmatprep.subr.mxu0 %v194
    %997 = vmatpush2.msra.mxu0 %v193
    %998 = vmatprep.mubr.f32.mxu0 %v84
    %999 = vmatmul.mubr.f32.gmra.mxu0 %v83
    %v1000 = vpop.f32.mrf.mxu0
    %v1001 = vadd.f32 %v684, %v1000
    %v1002 = vpop.f32.mrf.mxu0
    %v1003 = vadd.f32 %v688, %v1002
    %1004 = vmatprep.mubr.f32.mxu0 %v90
    %1005 = vmatmul.mubr.f32.gmra.mxu0 %v89
    %v1006 = vpop.f32.mrf.mxu0
    %v1007 = vadd.f32 %v684, %v1006
    %v1008 = vpop.f32.mrf.mxu0
    %v1009 = vadd.f32 %v688, %v1008
    %1010 = vdwg.mxu0
    %1011 = vmatprep.subr.mxu0 %v380
    %1012 = vmatpush1.msra.mxu0 %v379
    %1013 = vmatprep.subr.mxu0 %v374
    %1014 = vmatpush1.msra.mxu0 %v373
    %1015 = vmatprep.subr.mxu0 %v368
    %1016 = vmatpush1.msra.mxu0 %v367
    %1017 = vmatprep.subr.mxu0 %v362
    %1018 = vmatpush1.msra.mxu0 %v361
    %1019 = vmatprep.subr.mxu0 %v356
    %1020 = vmatpush1.msra.mxu0 %v355
    %1021 = vmatprep.subr.mxu0 %v350
    %1022 = vmatpush1.msra.mxu0 %v349
    %1023 = vmatprep.subr.mxu0 %v344
    %1024 = vmatpush1.msra.mxu0 %v343
    %1025 = vmatprep.subr.mxu0 %v338
    %1026 = vmatpush1.msra.mxu0 %v337
    %1027 = vmatprep.subr.mxu0 %v332
    %1028 = vmatpush1.msra.mxu0 %v331
    %1029 = vmatprep.subr.mxu0 %v326
    %1030 = vmatpush1.msra.mxu0 %v325
    %1031 = vmatprep.subr.mxu0 %v320
    %1032 = vmatpush1.msra.mxu0 %v319
    %1033 = vmatprep.subr.mxu0 %v314
    %1034 = vmatpush1.msra.mxu0 %v313
    %1035 = vmatprep.subr.mxu0 %v308
    %1036 = vmatpush1.msra.mxu0 %v307
    %1037 = vmatprep.subr.mxu0 %v302
    %1038 = vmatpush1.msra.mxu0 %v301
    %1039 = vmatprep.subr.mxu0 %v296
    %1040 = vmatpush1.msra.mxu0 %v295
    %1041 = vmatprep.subr.mxu0 %v290
    %1042 = vmatpush1.msra.mxu0 %v289
    %1043 = vmatprep.subr.mxu0 %v476
    %1044 = vmatpush2.msra.mxu0 %v475
    %1045 = vmatprep.subr.mxu0 %v470
    %1046 = vmatpush2.msra.mxu0 %v469
    %1047 = vmatprep.subr.mxu0 %v464
    %1048 = vmatpush2.msra.mxu0 %v463
    %1049 = vmatprep.subr.mxu0 %v458
    %1050 = vmatpush2.msra.mxu0 %v457
    %1051 = vmatprep.subr.mxu0 %v452
    %1052 = vmatpush2.msra.mxu0 %v451
    %1053 = vmatprep.subr.mxu0 %v446
    %1054 = vmatpush2.msra.mxu0 %v445
    %1055 = vmatprep.subr.mxu0 %v440
    %1056 = vmatpush2.msra.mxu0 %v439
    %1057 = vmatprep.subr.mxu0 %v434
    %1058 = vmatpush2.msra.mxu0 %v433
    %1059 = vmatprep.subr.mxu0 %v428
    %1060 = vmatpush2.msra.mxu0 %v427
    %1061 = vmatprep.subr.mxu0 %v422
    %1062 = vmatpush2.msra.mxu0 %v421
    %1063 = vmatprep.subr.mxu0 %v416
    %1064 = vmatpush2.msra.mxu0 %v415
    %1065 = vmatprep.subr.mxu0 %v410
    %1066 = vmatpush2.msra.mxu0 %v409
    %1067 = vmatprep.subr.mxu0 %v404
    %1068 = vmatpush2.msra.mxu0 %v403
    %1069 = vmatprep.subr.mxu0 %v398
    %1070 = vmatpush2.msra.mxu0 %v397
    %1071 = vmatprep.subr.mxu0 %v392
    %1072 = vmatpush2.msra.mxu0 %v391
    %1073 = vmatprep.subr.mxu0 %v386
    %1074 = vmatpush2.msra.mxu0 %v385
    %1075 = vmatprep.mubr.f32.mxu0 %v86
    %1076 = vmatmul.mubr.f32.gmra.mxu0 %v85
    %v1077 = vpop.f32.mrf.mxu0
    %v1078 = vadd.f32 %v1001, %v1077
    %v1079 = vpop.f32.mrf.mxu0
    %v1080 = vadd.f32 %v1003, %v1079
    %1081 = vmatprep.mubr.f32.mxu0 %v92
    %1082 = vmatmul.mubr.f32.gmra.mxu0 %v91
    %v1083 = vpop.f32.mrf.mxu0
    %v1084 = vadd.f32 %v1007, %v1083
    %v1085 = vpop.f32.mrf.mxu0
    %v1086 = vadd.f32 %v1009, %v1085
    %1087 = vdwg.mxu0
    %1088 = vmatprep.subr.mxu0 %v572
    %1089 = vmatpush1.msra.mxu0 %v571
    %1090 = vmatprep.subr.mxu0 %v566
    %1091 = vmatpush1.msra.mxu0 %v565
    %1092 = vmatprep.subr.mxu0 %v560
    %1093 = vmatpush1.msra.mxu0 %v559
    %1094 = vmatprep.subr.mxu0 %v554
    %1095 = vmatpush1.msra.mxu0 %v553
    %1096 = vmatprep.subr.mxu0 %v548
    %1097 = vmatpush1.msra.mxu0 %v547
    %1098 = vmatprep.subr.mxu0 %v542
    %1099 = vmatpush1.msra.mxu0 %v541
    %1100 = vmatprep.subr.mxu0 %v536
    %1101 = vmatpush1.msra.mxu0 %v535
    %1102 = vmatprep.subr.mxu0 %v530
    %1103 = vmatpush1.msra.mxu0 %v529
    %1104 = vmatprep.subr.mxu0 %v524
    %1105 = vmatpush1.msra.mxu0 %v523
    %1106 = vmatprep.subr.mxu0 %v518
    %1107 = vmatpush1.msra.mxu0 %v517
    %1108 = vmatprep.subr.mxu0 %v512
    %1109 = vmatpush1.msra.mxu0 %v511
    %1110 = vmatprep.subr.mxu0 %v506
    %1111 = vmatpush1.msra.mxu0 %v505
    %1112 = vmatprep.subr.mxu0 %v500
    %1113 = vmatpush1.msra.mxu0 %v499
    %1114 = vmatprep.subr.mxu0 %v494
    %1115 = vmatpush1.msra.mxu0 %v493
    %1116 = vmatprep.subr.mxu0 %v488
    %1117 = vmatpush1.msra.mxu0 %v487
    %1118 = vmatprep.subr.mxu0 %v482
    %1119 = vmatpush1.msra.mxu0 %v481
    %1120 = vmatprep.subr.mxu0 %v668
    %1121 = vmatpush2.msra.mxu0 %v667
    %1122 = vmatprep.subr.mxu0 %v662
    %1123 = vmatpush2.msra.mxu0 %v661
    %1124 = vmatprep.subr.mxu0 %v656
    %1125 = vmatpush2.msra.mxu0 %v655
    %1126 = vmatprep.subr.mxu0 %v650
    %1127 = vmatpush2.msra.mxu0 %v649
    %1128 = vmatprep.subr.mxu0 %v644
    %1129 = vmatpush2.msra.mxu0 %v643
    %1130 = vmatprep.subr.mxu0 %v638
    %1131 = vmatpush2.msra.mxu0 %v637
    %1132 = vmatprep.subr.mxu0 %v632
    %1133 = vmatpush2.msra.mxu0 %v631
    %1134 = vmatprep.subr.mxu0 %v626
    %1135 = vmatpush2.msra.mxu0 %v625
    %1136 = vmatprep.subr.mxu0 %v620
    %1137 = vmatpush2.msra.mxu0 %v619
    %1138 = vmatprep.subr.mxu0 %v614
    %1139 = vmatpush2.msra.mxu0 %v613
    %1140 = vmatprep.subr.mxu0 %v608
    %1141 = vmatpush2.msra.mxu0 %v607
    %1142 = vmatprep.subr.mxu0 %v602
    %1143 = vmatpush2.msra.mxu0 %v601
    %1144 = vmatprep.subr.mxu0 %v596
    %1145 = vmatpush2.msra.mxu0 %v595
    %1146 = vmatprep.subr.mxu0 %v590
    %1147 = vmatpush2.msra.mxu0 %v589
    %1148 = vmatprep.subr.mxu0 %v584
    %1149 = vmatpush2.msra.mxu0 %v583
    %1150 = vmatprep.subr.mxu0 %v578
    %1151 = vmatpush2.msra.mxu0 %v577
    %1152 = vmatprep.mubr.f32.mxu0 %v88
    %1153 = vmatmul.mubr.f32.gmra.mxu0 %v87
    %v1154 = vpop.f32.mrf.mxu0
    %v1155 = vadd.f32 %v1078, %v1154
    %v1156 = vpop.f32.mrf.mxu0
    %v1157 = vadd.f32 %v1080, %v1156
    %1158 = vmatprep.mubr.f32.mxu0 %v94
    %1159 = vmatmul.mubr.f32.gmra.mxu0 %v93
    %v1160 = vpop.f32.mrf.mxu0
    %v1161 = vadd.f32 %v1084, %v1160
    %v1162 = vpop.f32.mrf.mxu0
    %v1163 = vadd.f32 %v1086, %v1162
    %1164 = vdwg.mxu0
    %1165 = vmatprep.subr.mxu0 %v190
    %1166 = vmatpush1.msra.mxu0 %v189
    %1167 = vmatprep.subr.mxu0 %v184
    %1168 = vmatpush1.msra.mxu0 %v183
    %1169 = vmatprep.subr.mxu0 %v178
    %1170 = vmatpush1.msra.mxu0 %v177
    %1171 = vmatprep.subr.mxu0 %v172
    %1172 = vmatpush1.msra.mxu0 %v171
    %1173 = vmatprep.subr.mxu0 %v166
    %1174 = vmatpush1.msra.mxu0 %v165
    %1175 = vmatprep.subr.mxu0 %v160
    %1176 = vmatpush1.msra.mxu0 %v159
    %1177 = vmatprep.subr.mxu0 %v154
    %1178 = vmatpush1.msra.mxu0 %v153
    %1179 = vmatprep.subr.mxu0 %v148
    %1180 = vmatpush1.msra.mxu0 %v147
    %1181 = vmatprep.subr.mxu0 %v142
    %1182 = vmatpush1.msra.mxu0 %v141
    %1183 = vmatprep.subr.mxu0 %v136
    %1184 = vmatpush1.msra.mxu0 %v135
    %1185 = vmatprep.subr.mxu0 %v130
    %1186 = vmatpush1.msra.mxu0 %v129
    %1187 = vmatprep.subr.mxu0 %v124
    %1188 = vmatpush1.msra.mxu0 %v123
    %1189 = vmatprep.subr.mxu0 %v118
    %1190 = vmatpush1.msra.mxu0 %v117
    %1191 = vmatprep.subr.mxu0 %v112
    %1192 = vmatpush1.msra.mxu0 %v111
    %1193 = vmatprep.subr.mxu0 %v106
    %1194 = vmatpush1.msra.mxu0 %v105
    %1195 = vmatprep.subr.mxu0 %v100
    %1196 = vmatpush1.msra.mxu0 %v99
    %1197 = vmatprep.subr.mxu0 %v286
    %1198 = vmatpush2.msra.mxu0 %v285
    %1199 = vmatprep.subr.mxu0 %v280
    %1200 = vmatpush2.msra.mxu0 %v279
    %1201 = vmatprep.subr.mxu0 %v274
    %1202 = vmatpush2.msra.mxu0 %v273
    %1203 = vmatprep.subr.mxu0 %v268
    %1204 = vmatpush2.msra.mxu0 %v267
    %1205 = vmatprep.subr.mxu0 %v262
    %1206 = vmatpush2.msra.mxu0 %v261
    %1207 = vmatprep.subr.mxu0 %v256
    %1208 = vmatpush2.msra.mxu0 %v255
    %1209 = vmatprep.subr.mxu0 %v250
    %1210 = vmatpush2.msra.mxu0 %v249
    %1211 = vmatprep.subr.mxu0 %v244
    %1212 = vmatpush2.msra.mxu0 %v243
    %1213 = vmatprep.subr.mxu0 %v238
    %1214 = vmatpush2.msra.mxu0 %v237
    %1215 = vmatprep.subr.mxu0 %v232
    %1216 = vmatpush2.msra.mxu0 %v231
    %1217 = vmatprep.subr.mxu0 %v226
    %1218 = vmatpush2.msra.mxu0 %v225
    %1219 = vmatprep.subr.mxu0 %v220
    %1220 = vmatpush2.msra.mxu0 %v219
    %1221 = vmatprep.subr.mxu0 %v214
    %1222 = vmatpush2.msra.mxu0 %v213
    %1223 = vmatprep.subr.mxu0 %v208
    %1224 = vmatpush2.msra.mxu0 %v207
    %1225 = vmatprep.subr.mxu0 %v202
    %1226 = vmatpush2.msra.mxu0 %v201
    %1227 = vmatprep.subr.mxu0 %v196
    %1228 = vmatpush2.msra.mxu0 %v195
    %1229 = vmatprep.mubr.f32.mxu0 %v84
    %1230 = vmatmul.mubr.f32.gmra.mxu0 %v83
    %v1231 = vpop.f32.mrf.mxu0
    %v1232 = vadd.f32 %v692, %v1231
    %v1233 = vpop.f32.mrf.mxu0
    %v1234 = vadd.f32 %v696, %v1233
    %1235 = vmatprep.mubr.f32.mxu0 %v90
    %1236 = vmatmul.mubr.f32.gmra.mxu0 %v89
    %v1237 = vpop.f32.mrf.mxu0
    %v1238 = vadd.f32 %v692, %v1237
    %v1239 = vpop.f32.mrf.mxu0
    %v1240 = vadd.f32 %v696, %v1239
    %1241 = vdwg.mxu0
    %1242 = vmatprep.subr.mxu0 %v382
    %1243 = vmatpush1.msra.mxu0 %v381
    %1244 = vmatprep.subr.mxu0 %v376
    %1245 = vmatpush1.msra.mxu0 %v375
    %1246 = vmatprep.subr.mxu0 %v370
    %1247 = vmatpush1.msra.mxu0 %v369
    %1248 = vmatprep.subr.mxu0 %v364
    %1249 = vmatpush1.msra.mxu0 %v363
    %1250 = vmatprep.subr.mxu0 %v358
    %1251 = vmatpush1.msra.mxu0 %v357
    %1252 = vmatprep.subr.mxu0 %v352
    %1253 = vmatpush1.msra.mxu0 %v351
    %1254 = vmatprep.subr.mxu0 %v346
    %1255 = vmatpush1.msra.mxu0 %v345
    %1256 = vmatprep.subr.mxu0 %v340
    %1257 = vmatpush1.msra.mxu0 %v339
    %1258 = vmatprep.subr.mxu0 %v334
    %1259 = vmatpush1.msra.mxu0 %v333
    %1260 = vmatprep.subr.mxu0 %v328
    %1261 = vmatpush1.msra.mxu0 %v327
    %1262 = vmatprep.subr.mxu0 %v322
    %1263 = vmatpush1.msra.mxu0 %v321
    %1264 = vmatprep.subr.mxu0 %v316
    %1265 = vmatpush1.msra.mxu0 %v315
    %1266 = vmatprep.subr.mxu0 %v310
    %1267 = vmatpush1.msra.mxu0 %v309
    %1268 = vmatprep.subr.mxu0 %v304
    %1269 = vmatpush1.msra.mxu0 %v303
    %1270 = vmatprep.subr.mxu0 %v298
    %1271 = vmatpush1.msra.mxu0 %v297
    %1272 = vmatprep.subr.mxu0 %v292
    %1273 = vmatpush1.msra.mxu0 %v291
    %1274 = vmatprep.subr.mxu0 %v478
    %1275 = vmatpush2.msra.mxu0 %v477
    %1276 = vmatprep.subr.mxu0 %v472
    %1277 = vmatpush2.msra.mxu0 %v471
    %1278 = vmatprep.subr.mxu0 %v466
    %1279 = vmatpush2.msra.mxu0 %v465
    %1280 = vmatprep.subr.mxu0 %v460
    %1281 = vmatpush2.msra.mxu0 %v459
    %1282 = vmatprep.subr.mxu0 %v454
    %1283 = vmatpush2.msra.mxu0 %v453
    %1284 = vmatprep.subr.mxu0 %v448
    %1285 = vmatpush2.msra.mxu0 %v447
    %1286 = vmatprep.subr.mxu0 %v442
    %1287 = vmatpush2.msra.mxu0 %v441
    %1288 = vmatprep.subr.mxu0 %v436
    %1289 = vmatpush2.msra.mxu0 %v435
    %1290 = vmatprep.subr.mxu0 %v430
    %1291 = vmatpush2.msra.mxu0 %v429
    %1292 = vmatprep.subr.mxu0 %v424
    %1293 = vmatpush2.msra.mxu0 %v423
    %1294 = vmatprep.subr.mxu0 %v418
    %1295 = vmatpush2.msra.mxu0 %v417
    %1296 = vmatprep.subr.mxu0 %v412
    %1297 = vmatpush2.msra.mxu0 %v411
    %1298 = vmatprep.subr.mxu0 %v406
    %1299 = vmatpush2.msra.mxu0 %v405
    %1300 = vmatprep.subr.mxu0 %v400
    %1301 = vmatpush2.msra.mxu0 %v399
    %1302 = vmatprep.subr.mxu0 %v394
    %1303 = vmatpush2.msra.mxu0 %v393
    %1304 = vmatprep.subr.mxu0 %v388
    %1305 = vmatpush2.msra.mxu0 %v387
    %1306 = vmatprep.mubr.f32.mxu0 %v86
    %1307 = vmatmul.mubr.f32.gmra.mxu0 %v85
    %v1308 = vpop.f32.mrf.mxu0
    %v1309 = vadd.f32 %v1232, %v1308
    %v1310 = vpop.f32.mrf.mxu0
    %v1311 = vadd.f32 %v1234, %v1310
    %1312 = vmatprep.mubr.f32.mxu0 %v92
    %1313 = vmatmul.mubr.f32.gmra.mxu0 %v91
    %v1314 = vpop.f32.mrf.mxu0
    %v1315 = vadd.f32 %v1238, %v1314
    %v1316 = vpop.f32.mrf.mxu0
    %v1317 = vadd.f32 %v1240, %v1316
    %1318 = vdwg.mxu0
    %1319 = vmatprep.subr.mxu0 %v574
    %1320 = vmatpush1.msra.mxu0 %v573
    %1321 = vmatprep.subr.mxu0 %v568
    %1322 = vmatpush1.msra.mxu0 %v567
    %1323 = vmatprep.subr.mxu0 %v562
    %1324 = vmatpush1.msra.mxu0 %v561
    %1325 = vmatprep.subr.mxu0 %v556
    %1326 = vmatpush1.msra.mxu0 %v555
    %1327 = vmatprep.subr.mxu0 %v550
    %1328 = vmatpush1.msra.mxu0 %v549
    %1329 = vmatprep.subr.mxu0 %v544
    %1330 = vmatpush1.msra.mxu0 %v543
    %1331 = vmatprep.subr.mxu0 %v538
    %1332 = vmatpush1.msra.mxu0 %v537
    %1333 = vmatprep.subr.mxu0 %v532
    %1334 = vmatpush1.msra.mxu0 %v531
    %1335 = vmatprep.subr.mxu0 %v526
    %1336 = vmatpush1.msra.mxu0 %v525
    %1337 = vmatprep.subr.mxu0 %v520
    %1338 = vmatpush1.msra.mxu0 %v519
    %1339 = vmatprep.subr.mxu0 %v514
    %1340 = vmatpush1.msra.mxu0 %v513
    %1341 = vmatprep.subr.mxu0 %v508
    %1342 = vmatpush1.msra.mxu0 %v507
    %1343 = vmatprep.subr.mxu0 %v502
    %1344 = vmatpush1.msra.mxu0 %v501
    %1345 = vmatprep.subr.mxu0 %v496
    %1346 = vmatpush1.msra.mxu0 %v495
    %1347 = vmatprep.subr.mxu0 %v490
    %1348 = vmatpush1.msra.mxu0 %v489
    %1349 = vmatprep.subr.mxu0 %v484
    %1350 = vmatpush1.msra.mxu0 %v483
    %1351 = vmatprep.subr.mxu0 %v670
    %1352 = vmatpush2.msra.mxu0 %v669
    %1353 = vmatprep.subr.mxu0 %v664
    %1354 = vmatpush2.msra.mxu0 %v663
    %1355 = vmatprep.subr.mxu0 %v658
    %1356 = vmatpush2.msra.mxu0 %v657
    %1357 = vmatprep.subr.mxu0 %v652
    %1358 = vmatpush2.msra.mxu0 %v651
    %1359 = vmatprep.subr.mxu0 %v646
    %1360 = vmatpush2.msra.mxu0 %v645
    %1361 = vmatprep.subr.mxu0 %v640
    %1362 = vmatpush2.msra.mxu0 %v639
    %1363 = vmatprep.subr.mxu0 %v634
    %1364 = vmatpush2.msra.mxu0 %v633
    %1365 = vmatprep.subr.mxu0 %v628
    %1366 = vmatpush2.msra.mxu0 %v627
    %1367 = vmatprep.subr.mxu0 %v622
    %1368 = vmatpush2.msra.mxu0 %v621
    %1369 = vmatprep.subr.mxu0 %v616
    %1370 = vmatpush2.msra.mxu0 %v615
    %1371 = vmatprep.subr.mxu0 %v610
    %1372 = vmatpush2.msra.mxu0 %v609
    %1373 = vmatprep.subr.mxu0 %v604
    %1374 = vmatpush2.msra.mxu0 %v603
    %1375 = vmatprep.subr.mxu0 %v598
    %1376 = vmatpush2.msra.mxu0 %v597
    %1377 = vmatprep.subr.mxu0 %v592
    %1378 = vmatpush2.msra.mxu0 %v591
    %1379 = vmatprep.subr.mxu0 %v586
    %1380 = vmatpush2.msra.mxu0 %v585
    %1381 = vmatprep.subr.mxu0 %v580
    %1382 = vmatpush2.msra.mxu0 %v579
    %1383 = vmatprep.mubr.f32.mxu0 %v88
    %1384 = vmatmul.mubr.f32.gmra.mxu0 %v87
    %v1385 = vpop.f32.mrf.mxu0
    %v1386 = vadd.f32 %v1309, %v1385
    %v1387 = vpop.f32.mrf.mxu0
    %v1388 = vadd.f32 %v1311, %v1387
    %1389 = vmatprep.mubr.f32.mxu0 %v94
    %1390 = vmatmul.mubr.f32.gmra.mxu0 %v93
    %v1391 = vpop.f32.mrf.mxu0
    %v1392 = vadd.f32 %v1315, %v1391
    %v1393 = vpop.f32.mrf.mxu0
    %v1394 = vadd.f32 %v1317, %v1393
    %1395 = vdwg.mxu0
    %v1396 = vmul.f32 %v924, 0.5
    %v1397 = vmul.f32 %v926, 0.5
    %v1398 = vmul.f32 %v1155, 0.5
    %v1399 = vmul.f32 %v1157, 0.5
    %v1400 = vmul.f32 %v1386, 0.5
    %v1401 = vmul.f32 %v1388, 0.5
    %v1402 = vmul.f32 %v930, 0.5
    %v1403 = vmul.f32 %v932, 0.5
    %v1404 = vmul.f32 %v1161, 0.5
    %v1405 = vmul.f32 %v1163, 0.5
    %v1406 = vmul.f32 %v1392, 0.5
    %v1407 = vmul.f32 %v1394, 0.5
    %v1408 = vrcp.pop 1.4142135
    %v1409 = vmul.f32 %v924, %v1408
    %v1410 = vmul.f32 %v926, %v1408
    %v1411 = vmul.f32 %v1155, %v1408
    %v1412 = vmul.f32 %v1157, %v1408
    %v1413 = vmul.f32 %v1386, %v1408
    %v1414 = vmul.f32 %v1388, %v1408
    %v1415 = vmul.f32 %v930, %v1408
    %v1416 = vmul.f32 %v932, %v1408
    %v1417 = vmul.f32 %v1161, %v1408
    %v1418 = vmul.f32 %v1163, %v1408
    %v1419 = vmul.f32 %v1392, %v1408
    %v1420 = vmul.f32 %v1394, %v1408
    %v1421 = verf.f32.pop %v1409
    %v1422 = verf.f32.pop %v1410
    %v1423 = verf.f32.pop %v1411
    %v1424 = verf.f32.pop %v1412
    %v1425 = verf.f32.pop %v1413
    %v1426 = verf.f32.pop %v1414
    %v1427 = verf.f32.pop %v1415
    %v1428 = verf.f32.pop %v1416
    %v1429 = verf.f32.pop %v1417
    %v1430 = verf.f32.pop %v1418
    %v1431 = verf.f32.pop %v1419
    %v1432 = verf.f32.pop %v1420
    %v1433 = vadd.f32 %v1421, 1.0
    %v1434 = vadd.f32 %v1422, 1.0
    %v1435 = vadd.f32 %v1423, 1.0
    %v1436 = vadd.f32 %v1424, 1.0
    %v1437 = vadd.f32 %v1425, 1.0
    %v1438 = vadd.f32 %v1426, 1.0
    %v1439 = vadd.f32 %v1427, 1.0
    %v1440 = vadd.f32 %v1428, 1.0
    %v1441 = vadd.f32 %v1429, 1.0
    %v1442 = vadd.f32 %v1430, 1.0
    %v1443 = vadd.f32 %v1431, 1.0
    %v1444 = vadd.f32 %v1432, 1.0
    %v1445 = vmul.f32 %v1396, %v1433
    %v1446 = vmul.f32 %v1397, %v1434
    %v1447 = vmul.f32 %v1398, %v1435
    %v1448 = vmul.f32 %v1399, %v1436
    %v1449 = vmul.f32 %v1400, %v1437
    %v1450 = vmul.f32 %v1401, %v1438
    %v1451 = vmul.f32 %v1402, %v1439
    %v1452 = vmul.f32 %v1403, %v1440
    %v1453 = vmul.f32 %v1404, %v1441
    %v1454 = vmul.f32 %v1405, %v1442
    %v1455 = vmul.f32 %v1406, %v1443
    %v1456 = vmul.f32 %v1407, %v1444
    %v1457 = vadd.f32 %v1445, %v1446
    %v1458 = vadd.f32 %v1457, %v1447
    %v1459 = vadd.f32 %v1458, %v1448
    %v1460 = vadd.f32 %v1459, %v1449
    %v1461 = vadd.f32 %v1460, %v1450
    %1462 = vadd.xlane.f32.xlu0 %v1461
    %v1463 = vpop.xlane.xlu0 %1462
    %v1464 = vadd.f32 %v1451, %v1452
    %v1465 = vadd.f32 %v1464, %v1453
    %v1466 = vadd.f32 %v1465, %v1454
    %v1467 = vadd.f32 %v1466, %v1455
    %v1468 = vadd.f32 %v1467, %v1456
    %1469 = vadd.xlane.f32.xlu0 %v1468
    %v1470 = vpop.xlane.xlu0 %1469
    %v1471 = vrcp.pop 768.0
    %v1472 = vmul.f32 %v1463, %v1471
    %v1473 = vmul.f32 %v1470, %v1471
    %v1474 = vsub.f32 %v1445, %v1472
    %v1475 = vsub.f32 %v1446, %v1472
    %v1476 = vsub.f32 %v1447, %v1472
    %v1477 = vsub.f32 %v1448, %v1472
    %v1478 = vsub.f32 %v1449, %v1472
    %v1479 = vsub.f32 %v1450, %v1472
    %v1480 = vsub.f32 %v1451, %v1473
    %v1481 = vsub.f32 %v1452, %v1473
    %v1482 = vsub.f32 %v1453, %v1473
    %v1483 = vsub.f32 %v1454, %v1473
    %v1484 = vsub.f32 %v1455, %v1473
    %v1485 = vsub.f32 %v1456, %v1473
    %v1486 = vmul.f32 %v1474, %v1474
    %v1487 = vmul.f32 %v1475, %v1475
    %v1488 = vmul.f32 %v1476, %v1476
    %v1489 = vmul.f32 %v1477, %v1477
    %v1490 = vmul.f32 %v1478, %v1478
    %v1491 = vmul.f32 %v1479, %v1479
    %v1492 = vmul.f32 %v1480, %v1480
    %v1493 = vmul.f32 %v1481, %v1481
    %v1494 = vmul.f32 %v1482, %v1482
    %v1495 = vmul.f32 %v1483, %v1483
    %v1496 = vmul.f32 %v1484, %v1484
    %v1497 = vmul.f32 %v1485, %v1485
    %v1498 = vadd.f32 %v1486, %v1487
    %v1499 = vadd.f32 %v1498, %v1488
    %v1500 = vadd.f32 %v1499, %v1489
    %v1501 = vadd.f32 %v1500, %v1490
    %v1502 = vadd.f32 %v1501, %v1491
    %1503 = vadd.xlane.f32.xlu0 %v1502
    %v1504 = vpop.xlane.xlu0 %1503
    %v1505 = vadd.f32 %v1492, %v1493
    %v1506 = vadd.f32 %v1505, %v1494
    %v1507 = vadd.f32 %v1506, %v1495
    %v1508 = vadd.f32 %v1507, %v1496
    %v1509 = vadd.f32 %v1508, %v1497
    %1510 = vadd.xlane.f32.xlu0 %v1509
    %v1511 = vpop.xlane.xlu0 %1510
    %v1512 = vmul.f32 %v1504, %v1471
    %v1513 = vmul.f32 %v1511, %v1471
    %v1514 = vadd.f32 %v1512, 1e-12
    %v1515 = vadd.f32 %v1513, 1e-12
    %v1516 = vrsqrt.pop %v1514
    %v1517 = vrsqrt.pop %v1515
    %v1518 = vmul.f32 %v1474, %v1516
    %v1519 = vmul.f32 %v1475, %v1516
    %v1520 = vmul.f32 %v1476, %v1516
    %v1521 = vmul.f32 %v1477, %v1516
    %v1522 = vmul.f32 %v1478, %v1516
    %v1523 = vmul.f32 %v1479, %v1516
    %v1524 = vmul.f32 %v1480, %v1517
    %v1525 = vmul.f32 %v1481, %v1517
    %v1526 = vmul.f32 %v1482, %v1517
    %v1527 = vmul.f32 %v1483, %v1517
    %v1528 = vmul.f32 %v1484, %v1517
    %v1529 = vmul.f32 %v1485, %v1517
    %v1530 = vld [vmem:[#allocation8] sm:$0x3f]
    %v1532 = vlaneseq
    %v1533 = vshrl.u32 %v1532, 7
    %v1534 = vsub.s32 0, %v1533
    %v1535 = vrot.slane %v1530, %v1534
    %v1536 = vlaneseq
    %v1537 = vshrl.u32 %v1536, 7
    %v1538 = vsub.s32 1, %v1537
    %v1539 = vrot.slane %v1530, %v1538
    %v1540 = vlaneseq
    %v1541 = vshrl.u32 %v1540, 7
    %v1542 = vsub.s32 2, %v1541
    %v1543 = vrot.slane %v1530, %v1542
    %v1544 = vlaneseq
    %v1545 = vshrl.u32 %v1544, 7
    %v1546 = vsub.s32 3, %v1545
    %v1547 = vrot.slane %v1530, %v1546
    %v1548 = vlaneseq
    %v1549 = vshrl.u32 %v1548, 7
    %v1550 = vsub.s32 4, %v1549
    %v1551 = vrot.slane %v1530, %v1550
    %v1552 = vlaneseq
    %v1553 = vshrl.u32 %v1552, 7
    %v1554 = vsub.s32 5, %v1553
    %v1555 = vrot.slane %v1530, %v1554
    %v1562 = vmul.f32 %v1518, %v1535
    %v1563 = vmul.f32 %v1519, %v1539
    %v1564 = vmul.f32 %v1520, %v1543
    %v1565 = vmul.f32 %v1521, %v1547
    %v1566 = vmul.f32 %v1522, %v1551
    %v1567 = vmul.f32 %v1523, %v1555
    %v1568 = vmul.f32 %v1524, %v1535
    %v1569 = vmul.f32 %v1525, %v1539
    %v1570 = vmul.f32 %v1526, %v1543
    %v1571 = vmul.f32 %v1527, %v1547
    %v1572 = vmul.f32 %v1528, %v1551
    %v1573 = vmul.f32 %v1529, %v1555
    %v1574 = vld [vmem:[#allocation10] sm:$0x3f]
    %v1576 = vlaneseq
    %v1577 = vshrl.u32 %v1576, 7
    %v1578 = vsub.s32 0, %v1577
    %v1579 = vrot.slane %v1574, %v1578
    %v1580 = vlaneseq
    %v1581 = vshrl.u32 %v1580, 7
    %v1582 = vsub.s32 1, %v1581
    %v1583 = vrot.slane %v1574, %v1582
    %v1584 = vlaneseq
    %v1585 = vshrl.u32 %v1584, 7
    %v1586 = vsub.s32 2, %v1585
    %v1587 = vrot.slane %v1574, %v1586
    %v1588 = vlaneseq
    %v1589 = vshrl.u32 %v1588, 7
    %v1590 = vsub.s32 3, %v1589
    %v1591 = vrot.slane %v1574, %v1590
    %v1592 = vlaneseq
    %v1593 = vshrl.u32 %v1592, 7
    %v1594 = vsub.s32 4, %v1593
    %v1595 = vrot.slane %v1574, %v1594
    %v1596 = vlaneseq
    %v1597 = vshrl.u32 %v1596, 7
    %v1598 = vsub.s32 5, %v1597
    %v1599 = vrot.slane %v1574, %v1598
    %v1606 = vadd.f32 %v1562, %v1579
    %v1607 = vadd.f32 %v1563, %v1583
    %v1608 = vadd.f32 %v1564, %v1587
    %v1609 = vadd.f32 %v1565, %v1591
    %v1610 = vadd.f32 %v1566, %v1595
    %v1611 = vadd.f32 %v1567, %v1599
    %v1612 = vadd.f32 %v1568, %v1579
    %v1613 = vadd.f32 %v1569, %v1583
    %v1614 = vadd.f32 %v1570, %v1587
    %v1615 = vadd.f32 %v1571, %v1591
    %v1616 = vadd.f32 %v1572, %v1595
    %v1617 = vadd.f32 %v1573, %v1599
    %1618 = vst [vmem:[#allocation11] sm:$0xff] %v1606
    %1619 = vst [vmem:[#allocation11 + $0x8] sm:$0xff] %v1607
    %1620 = vst [vmem:[#allocation11 + $0x10] sm:$0xff] %v1608
    %1621 = vst [vmem:[#allocation11 + $0x18] sm:$0xff] %v1609
    %1622 = vst [vmem:[#allocation11 + $0x20] sm:$0xff] %v1610
    %1623 = vst [vmem:[#allocation11 + $0x28] sm:$0xff] %v1611
    %1624 = vst [vmem:[#allocation11 + $0x30] sm:$0xff] %v1612
    %1625 = vst [vmem:[#allocation11 + $0x38] sm:$0xff] %v1613
    %1626 = vst [vmem:[#allocation11 + $0x40] sm:$0xff] %v1614
    %1627 = vst [vmem:[#allocation11 + $0x48] sm:$0xff] %v1615
    %1628 = vst [vmem:[#allocation11 + $0x50] sm:$0xff] %v1616
    %1629 = vst [vmem:[#allocation11 + $0x58] sm:$0xff] %v1617
    // Predicated region
    $region42: #{tpu_custom_call.1} parent=1 // pred_check
      _
    $region43: #{tpu_custom_call.1} parent=1 // pred_check_branch
      %1631 = sbr.rel (0) target = $region45
    $region44: #{tpu_custom_call.1} parent=1 // pred_region
      %s1633 = ssub.s32 1536, 1536
      %1634 = vsyncadd [#allocation4], %s1633
      %s1635 = sshll.u32 [#allocation11], 4
      %s1636 = int_to_ptr.vmem [resolvable:$true] %s1635
      %1641 = dma.vmem_to_hbm [thread:$0]  %s1636, 1536, %s5, [#allocation4], 768, 768, 48
    $region45: #{tpu_custom_call.1} parent=1 // pred_fallthru
      _
    // Predicated region
    $region46: #{tpu_custom_call.1} parent=1 // pred_check
      _
    $region47: #{tpu_custom_call.1} parent=1 // pred_check_branch
      %1643 = sbr.rel (0) target = $region49
    $region48: #{tpu_custom_call.1} parent=1 // pred_region
      %1644 = dma.done [#allocation4], 1536
    $region49: #{tpu_custom_call.1} parent=1 // pred_fallthru
      _
    %1645 = vsyncpa [#allocation3], 1
    %1646 = vsyncpa [#allocation6], 1
    %1647 = vsyncpa [#allocation9], 1
    %1648 = vsyncpa [#allocation4], 1

</llo_original>
